<compile_context>
chip_gen: v6e
topology: v6e:2x2x1
jax: 0.10.0
libtpu: 0.0.40
codegen_flags: <defaults>
</compile_context>

<pallas_src>
import functools
import math

import jax
import jax.numpy as jnp
from jax.experimental import pallas as pl
from jax.experimental.pallas import tpu as pltpu

# ---------------- model config (small, consistent with the module) ----------
DMODEL = 32
NUM_HEADS = 4
DK = DMODEL // NUM_HEADS
EXPAND = 4
HIDDEN = DMODEL * EXPAND
BATCH = 2
SEQ = 8
LN_EPS = 1e-5

# packed-vector row indices (rows of the (7, HIDDEN) "vecs" input)
_BO, _G1, _B1, _BB2, _G2, _B2, _BB1 = range(7)


# ---------------------------- Pallas kernel ---------------------------------
def encoder_block_kernel(qkv_ref,        # (B*S, 3D) activations [q | k | v]
                         wqkv_ref,       # (3D, 3D) block-diag qkv projection
                         w_ref,          # (3D, HIDDEN): [wo.T pad | w1.T | w2]
                         vecs_ref,       # (7, HIDDEN) packed bias/LN vectors
                         o_ref,          # (B*S, D) output
                         *, batch, seq, heads, dmodel):
    D = dmodel
    dk = D // heads
    inv_sqrt_dk = 1.0 / math.sqrt(dk)

    qkv = qkv_ref[...]                       # (M, 3D)
    q_resid = qkv[:, :D]                     # residual = original query

    # unpack the small vectors with static slices (zero-padded to HIDDEN lanes)
    bo = vecs_ref[_BO:_BO + 1, :D]
    g1 = vecs_ref[_G1:_G1 + 1, :D]
    b1 = vecs_ref[_B1:_B1 + 1, :D]
    bb2 = vecs_ref[_BB2:_BB2 + 1, :D]
    g2 = vecs_ref[_G2:_G2 + 1, :D]
    b2 = vecs_ref[_B2:_B2 + 1, :D]
    bb1 = vecs_ref[_BB1:_BB1 + 1, :]

    # unpack weights with static slices
    wot = w_ref[0:D, 0:D]                    # (D, D)   = wo.T
    w1t = w_ref[D:2 * D, :]                  # (D, HIDDEN) = w1.T
    w2 = w_ref[2 * D:3 * D, :]               # (D, HIDDEN) = w2 (un-transposed)

    # --- single fused matmul: per-head Q/K/V projections ---------------------
    proj = jnp.dot(qkv, wqkv_ref[...],
                   preferred_element_type=jnp.float32)        # (M, 3D)

    # --- per-(batch, head) attention; contexts kept as values ----------------
    ctx_rows = []
    for b in range(batch):
        r0 = b * seq
        head_ctx = []
        for h in range(heads):
            c0 = h * dk
            qh = proj[r0:r0 + seq, c0:c0 + dk]
            kh = proj[r0:r0 + seq, D + c0:D + c0 + dk]
            vh = proj[r0:r0 + seq, 2 * D + c0:2 * D + c0 + dk]
            # contract dim 1 of both operands -> q @ k^T without explicit .T
            energy = jax.lax.dot_general(
                qh, kh, (((1,), (1,)), ((), ())),
                preferred_element_type=jnp.float32) * inv_sqrt_dk
            m = jnp.max(energy, axis=-1, keepdims=True)
            p = jnp.exp(energy - m)
            attn = p / jnp.sum(p, axis=-1, keepdims=True)
            head_ctx.append(jnp.dot(attn, vh,
                                    preferred_element_type=jnp.float32))
        ctx_rows.append(jnp.concatenate(head_ctx, axis=-1))    # (seq, D)
    ctx = jnp.concatenate(ctx_rows, axis=0)                    # (M, D)

    attn_out = jnp.dot(ctx, wot, preferred_element_type=jnp.float32) + bo

    def layer_norm(x, g, bias):
        # independent reductions: var = E[x^2] - mu^2
        mu = jnp.mean(x, axis=-1, keepdims=True)
        ms = jnp.mean(x * x, axis=-1, keepdims=True)
        var = ms - mu * mu
        return (x - mu) * jax.lax.rsqrt(var + LN_EPS) * g + bias

    # --- residual + LayerNorm 1 (dropout == identity) -------------------------
    x = layer_norm(attn_out + q_resid, g1, b1)

    # --- feed-forward network --------------------------------------------------
    hid = jnp.dot(x, w1t, preferred_element_type=jnp.float32) + bb1
    hid = jnp.maximum(hid, 0.0)
    y = jax.lax.dot_general(hid, w2, (((1,), (1,)), ((), ())),
                            preferred_element_type=jnp.float32) + bb2

    # --- residual + LayerNorm 2 (dropout == identity) -------------------------
    o_ref[...] = layer_norm(x + y, g2, b2)


# -------------------- one-time weight packing (at init) ----------------------
def pack_params(params):
    """Pack/pre-transpose all weights once; result is passed to encoder_block."""
    def head_bd(w):   # (dk, dk) -> (D, D) block-diag of w.T over heads
        return jax.scipy.linalg.block_diag(*([w.T] * NUM_HEADS))

    # (3D, 3D) block-diag so [q|k|v] @ wqkv_bd = [q_proj | k_proj | v_proj]
    wqkv_bd = jax.scipy.linalg.block_diag(
        head_bd(params["wq"]), head_bd(params["wk"]), head_bd(params["wv"]))

    wot_pad = jnp.pad(params["wo"].T, ((0, 0), (0, HIDDEN - DMODEL)))  # (D, HIDDEN)
    w_packed = jnp.concatenate(
        [wot_pad, params["w1"].T, params["w2"]], axis=0)               # (3D, HIDDEN)

    def pad_row(r):   # (1, D) -> (1, HIDDEN)
        return jnp.pad(r, ((0, 0), (0, HIDDEN - DMODEL)))

    vecs = jnp.concatenate(
        [pad_row(params["bo"]), pad_row(params["g1"]), pad_row(params["b1"]),
         pad_row(params["bb2"]), pad_row(params["g2"]), pad_row(params["b2"]),
         params["bb1"]], axis=0)                                       # (7, HIDDEN)

    return {"wqkv_bd": wqkv_bd.astype(jnp.float32),
            "w_packed": w_packed.astype(jnp.float32),
            "vecs": vecs.astype(jnp.float32)}


# ------------------------------ wrapper --------------------------------------
@jax.jit
def encoder_block(q, k, v, packed):
    B, S, D = q.shape
    M = B * S

    # the only per-call preprocessing: fold batch into M and fuse q/k/v lanes
    qkv = jnp.concatenate(
        [q.reshape(M, D), k.reshape(M, D), v.reshape(M, D)], axis=-1)  # (M, 3D)

    def full(shape):
        return pl.BlockSpec(shape, lambda i, _n=len(shape): (0,) * _n)

    kernel = functools.partial(encoder_block_kernel,
                               batch=B, seq=S, heads=NUM_HEADS, dmodel=D)

    out = pl.pallas_call(
        kernel,
        out_shape=jax.ShapeDtypeStruct((M, D), jnp.float32),
        grid=(1,),
        in_specs=[full(qkv.shape),
                  full(packed["wqkv_bd"].shape),
                  full(packed["w_packed"].shape),
                  full(packed["vecs"].shape)],
        out_specs=pl.BlockSpec((M, D), lambda i: (0, 0)),
        compiler_params=pltpu.CompilerParams(
            dimension_semantics=("arbitrary",)),
    )(qkv, packed["wqkv_bd"], packed["w_packed"], packed["vecs"])

    return out.reshape(B, S, D)


# ------------------------- pure-JAX reference --------------------------------
def encoder_block_ref(q, k, v, p):
    B, S, D = q.shape
    qh = q.reshape(B, S, NUM_HEADS, DK) @ p["wq"].T
    kh = k.reshape(B, S, NUM_HEADS, DK) @ p["wk"].T
    vh = v.reshape(B, S, NUM_HEADS, DK) @ p["wv"].T
    energy = jnp.einsum("abcd,aecd->acbe", qh, kh) / jnp.sqrt(jnp.float32(DK))
    attn = jax.nn.softmax(energy, axis=-1)
    ctx = jnp.einsum("abcd,adbf->acbf", attn, vh).reshape(B, S, D)
    attn_out = ctx @ p["wo"].T + p["bo"][0]

    def layernorm(x, g, b):
        mu = jnp.mean(x, axis=-1, keepdims=True)
        var = jnp.mean((x - mu) ** 2, axis=-1, keepdims=True)
        return (x - mu) * jax.lax.rsqrt(var + LN_EPS) * g[0] + b[0]

    x = layernorm(attn_out + q, p["g1"], p["b1"])
    y = jnp.maximum(x @ p["w1"].T + p["bb1"][0], 0.0) @ p["w2"].T + p["bb2"][0]
    return layernorm(x + y, p["g2"], p["b2"])


# ------------------------------- main -----------------------------------------
if __name__ == "__main__":
    key = jax.random.PRNGKey(0)
    ks = jax.random.split(key, 16)

    def init(k, shape, scale=0.1):
        return (scale * jax.random.normal(k, shape)).astype(jnp.float32)

    params = {
        "wq": init(ks[0], (DK, DK)),
        "wk": init(ks[1], (DK, DK)),
        "wv": init(ks[2], (DK, DK)),
        "wo": init(ks[3], (DMODEL, DMODEL)),
        "bo": init(ks[4], (1, DMODEL)),
        "g1": jnp.ones((1, DMODEL), jnp.float32),
        "b1": jnp.zeros((1, DMODEL), jnp.float32),
        "w1": init(ks[5], (HIDDEN, DMODEL)),
        "bb1": init(ks[6], (1, HIDDEN)),
        "w2": init(ks[7], (DMODEL, HIDDEN)),
        "bb2": init(ks[8], (1, DMODEL)),
        "g2": jnp.ones((1, DMODEL), jnp.float32),
        "b2": jnp.zeros((1, DMODEL), jnp.float32),
    }

    q = init(ks[9], (BATCH, SEQ, DMODEL), scale=1.0)
    k = init(ks[10], (BATCH, SEQ, DMODEL), scale=1.0)
    v = init(ks[11], (BATCH, SEQ, DMODEL), scale=1.0)

    # one-time packing, outside the per-call path
    packed = pack_params(params)
    packed = jax.tree_util.tree_map(jax.block_until_ready, packed)

    out = encoder_block(q, k, v, packed)
    out = jax.block_until_ready(out)

    ref = encoder_block_ref(q, k, v, params)
    assert out.shape == (BATCH, SEQ, DMODEL)
    assert jnp.allclose(out, ref, atol=1e-4, rtol=1e-4), "mismatch vs reference"

    print("KERNEL_OK")
</pallas_src>

<mosaic_0001>
module attributes {stable_mosaic.version = 11 : i64} {
  func.func @encoder_block_kernel(%arg0: i32, %arg1: memref<16x96xf32, #tpu.memory_space<vmem>>, %arg2: memref<96x96xf32, #tpu.memory_space<vmem>>, %arg3: memref<96x128xf32, #tpu.memory_space<vmem>>, %arg4: memref<7x128xf32, #tpu.memory_space<vmem>>, %arg5: memref<16x32xf32, #tpu.memory_space<vmem>>) attributes {dimension_semantics = [#tpu.dimension_semantics<arbitrary>], iteration_bounds = array<i64: 1>, scalar_prefetch = 0 : i64, scratch_operands = 0 : i64, tpu.core_type = #tpu.core_type<tc>, window_params = [{pipeline_mode = #tpu.pipeline_mode<synchronous>, transform_indices = @transform_0, window_bounds = array<i64: 16, 96>}, {pipeline_mode = #tpu.pipeline_mode<synchronous>, transform_indices = @transform_1, window_bounds = array<i64: 96, 96>}, {pipeline_mode = #tpu.pipeline_mode<synchronous>, transform_indices = @transform_2, window_bounds = array<i64: 96, 128>}, {pipeline_mode = #tpu.pipeline_mode<synchronous>, transform_indices = @transform_3, window_bounds = array<i64: 7, 128>}, {pipeline_mode = #tpu.pipeline_mode<synchronous>, transform_indices = @transform_4, window_bounds = array<i64: 16, 32>}]} {
    %c0 = arith.constant 0 : index
    %c0_0 = arith.constant 0 : index
    %0 = vector.load %arg1[%c0, %c0_0] : memref<16x96xf32, #tpu.memory_space<vmem>>, vector<16x96xf32>
    %1 = vector.extract_strided_slice %0 {offsets = [0, 0], sizes = [16, 32], strides = [1, 1]} : vector<16x96xf32> to vector<16x32xf32>
    %c0_1 = arith.constant 0 : index
    %c0_2 = arith.constant 0 : index
    %2 = vector.load %arg4[%c0_1, %c0_2] : memref<7x128xf32, #tpu.memory_space<vmem>>, vector<1x32xf32>
    %c1 = arith.constant 1 : index
    %c0_3 = arith.constant 0 : index
    %3 = vector.load %arg4[%c1, %c0_3] : memref<7x128xf32, #tpu.memory_space<vmem>>, vector<1x32xf32>
    %c2 = arith.constant 2 : index
    %c0_4 = arith.constant 0 : index
    %4 = vector.load %arg4[%c2, %c0_4] : memref<7x128xf32, #tpu.memory_space<vmem>>, vector<1x32xf32>
    %c3 = arith.constant 3 : index
    %c0_5 = arith.constant 0 : index
    %5 = vector.load %arg4[%c3, %c0_5] : memref<7x128xf32, #tpu.memory_space<vmem>>, vector<1x32xf32>
    %c4 = arith.constant 4 : index
    %c0_6 = arith.constant 0 : index
    %6 = vector.load %arg4[%c4, %c0_6] : memref<7x128xf32, #tpu.memory_space<vmem>>, vector<1x32xf32>
    %c5 = arith.constant 5 : index
    %c0_7 = arith.constant 0 : index
    %7 = vector.load %arg4[%c5, %c0_7] : memref<7x128xf32, #tpu.memory_space<vmem>>, vector<1x32xf32>
    %c6 = arith.constant 6 : index
    %c0_8 = arith.constant 0 : index
    %8 = vector.load %arg4[%c6, %c0_8] : memref<7x128xf32, #tpu.memory_space<vmem>>, vector<1x128xf32>
    %c0_9 = arith.constant 0 : index
    %c0_10 = arith.constant 0 : index
    %9 = vector.load %arg3[%c0_9, %c0_10] : memref<96x128xf32, #tpu.memory_space<vmem>>, vector<32x32xf32>
    %c32 = arith.constant 32 : index
    %c0_11 = arith.constant 0 : index
    %10 = vector.load %arg3[%c32, %c0_11] : memref<96x128xf32, #tpu.memory_space<vmem>>, vector<32x128xf32>
    %c64 = arith.constant 64 : index
    %c0_12 = arith.constant 0 : index
    %11 = vector.load %arg3[%c64, %c0_12] : memref<96x128xf32, #tpu.memory_space<vmem>>, vector<32x128xf32>
    %c0_13 = arith.constant 0 : index
    %c0_14 = arith.constant 0 : index
    %12 = vector.load %arg2[%c0_13, %c0_14] : memref<96x96xf32, #tpu.memory_space<vmem>>, vector<96x96xf32>
    %cst = arith.constant dense<0.000000e+00> : vector<16x96xf32>
    %13 = tpu.matmul %0, %12, %cst {dimension_numbers = #tpu.dot_dimension_numbers<[1], [0], [0], [1], [0, 0, 1, 1], [], []>} : vector<16x96xf32>, vector<96x96xf32>, vector<16x96xf32> -> vector<16x96xf32>
    %14 = vector.extract_strided_slice %13 {offsets = [0, 0], sizes = [8, 8], strides = [1, 1]} : vector<16x96xf32> to vector<8x8xf32>
    %15 = vector.extract_strided_slice %13 {offsets = [0, 32], sizes = [8, 8], strides = [1, 1]} : vector<16x96xf32> to vector<8x8xf32>
    %16 = vector.extract_strided_slice %13 {offsets = [0, 64], sizes = [8, 8], strides = [1, 1]} : vector<16x96xf32> to vector<8x8xf32>
    %cst_15 = arith.constant dense<0.000000e+00> : vector<8x8xf32>
    %17 = tpu.matmul %14, %15, %cst_15 {dimension_numbers = #tpu.dot_dimension_numbers<[1], [1], [0], [0], [0, 0, 1, 0], [], []>} : vector<8x8xf32>, vector<8x8xf32>, vector<8x8xf32> -> vector<8x8xf32>
    %cst_16 = arith.constant 0.353553385 : f32
    %18 = vector.broadcast %cst_16 : f32 to vector<8x8xf32>
    %19 = arith.mulf %17, %18 : vector<8x8xf32>
    %cst_17 = arith.constant dense<0xFF800000> : vector<8xf32>
    %20 = vector.multi_reduction <maximumf>, %19, %cst_17 [1] : vector<8x8xf32> to vector<8xf32>
    %21 = vector.shape_cast %20 : vector<8xf32> to vector<8x1xf32>
    %22 = vector.broadcast %21 : vector<8x1xf32> to vector<8x8xf32>
    %23 = arith.subf %19, %22 : vector<8x8xf32>
    %24 = math.exp %23 : vector<8x8xf32>
    %cst_18 = arith.constant dense<0.000000e+00> : vector<8xf32>
    %25 = vector.multi_reduction <add>, %24, %cst_18 [1] : vector<8x8xf32> to vector<8xf32>
    %26 = vector.shape_cast %25 : vector<8xf32> to vector<8x1xf32>
    %27 = vector.broadcast %26 : vector<8x1xf32> to vector<8x8xf32>
    %28 = arith.divf %24, %27 : vector<8x8xf32>
    %cst_19 = arith.constant dense<0.000000e+00> : vector<8x8xf32>
    %29 = tpu.matmul %28, %16, %cst_19 {dimension_numbers = #tpu.dot_dimension_numbers<[1], [0], [0], [1], [0, 0, 1, 1], [], []>} : vector<8x8xf32>, vector<8x8xf32>, vector<8x8xf32> -> vector<8x8xf32>
    %30 = vector.extract_strided_slice %13 {offsets = [0, 8], sizes = [8, 8], strides = [1, 1]} : vector<16x96xf32> to vector<8x8xf32>
    %31 = vector.extract_strided_slice %13 {offsets = [0, 40], sizes = [8, 8], strides = [1, 1]} : vector<16x96xf32> to vector<8x8xf32>
    %32 = vector.extract_strided_slice %13 {offsets = [0, 72], sizes = [8, 8], strides = [1, 1]} : vector<16x96xf32> to vector<8x8xf32>
    %cst_20 = arith.constant dense<0.000000e+00> : vector<8x8xf32>
    %33 = tpu.matmul %30, %31, %cst_20 {dimension_numbers = #tpu.dot_dimension_numbers<[1], [1], [0], [0], [0, 0, 1, 0], [], []>} : vector<8x8xf32>, vector<8x8xf32>, vector<8x8xf32> -> vector<8x8xf32>
    %cst_21 = arith.constant 0.353553385 : f32
    %34 = vector.broadcast %cst_21 : f32 to vector<8x8xf32>
    %35 = arith.mulf %33, %34 : vector<8x8xf32>
    %cst_22 = arith.constant dense<0xFF800000> : vector<8xf32>
    %36 = vector.multi_reduction <maximumf>, %35, %cst_22 [1] : vector<8x8xf32> to vector<8xf32>
    %37 = vector.shape_cast %36 : vector<8xf32> to vector<8x1xf32>
    %38 = vector.broadcast %37 : vector<8x1xf32> to vector<8x8xf32>
    %39 = arith.subf %35, %38 : vector<8x8xf32>
    %40 = math.exp %39 : vector<8x8xf32>
    %cst_23 = arith.constant dense<0.000000e+00> : vector<8xf32>
    %41 = vector.multi_reduction <add>, %40, %cst_23 [1] : vector<8x8xf32> to vector<8xf32>
    %42 = vector.shape_cast %41 : vector<8xf32> to vector<8x1xf32>
    %43 = vector.broadcast %42 : vector<8x1xf32> to vector<8x8xf32>
    %44 = arith.divf %40, %43 : vector<8x8xf32>
    %cst_24 = arith.constant dense<0.000000e+00> : vector<8x8xf32>
    %45 = tpu.matmul %44, %32, %cst_24 {dimension_numbers = #tpu.dot_dimension_numbers<[1], [0], [0], [1], [0, 0, 1, 1], [], []>} : vector<8x8xf32>, vector<8x8xf32>, vector<8x8xf32> -> vector<8x8xf32>
    %46 = vector.extract_strided_slice %13 {offsets = [0, 16], sizes = [8, 8], strides = [1, 1]} : vector<16x96xf32> to vector<8x8xf32>
    %47 = vector.extract_strided_slice %13 {offsets = [0, 48], sizes = [8, 8], strides = [1, 1]} : vector<16x96xf32> to vector<8x8xf32>
    %48 = vector.extract_strided_slice %13 {offsets = [0, 80], sizes = [8, 8], strides = [1, 1]} : vector<16x96xf32> to vector<8x8xf32>
    %cst_25 = arith.constant dense<0.000000e+00> : vector<8x8xf32>
    %49 = tpu.matmul %46, %47, %cst_25 {dimension_numbers = #tpu.dot_dimension_numbers<[1], [1], [0], [0], [0, 0, 1, 0], [], []>} : vector<8x8xf32>, vector<8x8xf32>, vector<8x8xf32> -> vector<8x8xf32>
    %cst_26 = arith.constant 0.353553385 : f32
    %50 = vector.broadcast %cst_26 : f32 to vector<8x8xf32>
    %51 = arith.mulf %49, %50 : vector<8x8xf32>
    %cst_27 = arith.constant dense<0xFF800000> : vector<8xf32>
    %52 = vector.multi_reduction <maximumf>, %51, %cst_27 [1] : vector<8x8xf32> to vector<8xf32>
    %53 = vector.shape_cast %52 : vector<8xf32> to vector<8x1xf32>
    %54 = vector.broadcast %53 : vector<8x1xf32> to vector<8x8xf32>
    %55 = arith.subf %51, %54 : vector<8x8xf32>
    %56 = math.exp %55 : vector<8x8xf32>
    %cst_28 = arith.constant dense<0.000000e+00> : vector<8xf32>
    %57 = vector.multi_reduction <add>, %56, %cst_28 [1] : vector<8x8xf32> to vector<8xf32>
    %58 = vector.shape_cast %57 : vector<8xf32> to vector<8x1xf32>
    %59 = vector.broadcast %58 : vector<8x1xf32> to vector<8x8xf32>
    %60 = arith.divf %56, %59 : vector<8x8xf32>
    %cst_29 = arith.constant dense<0.000000e+00> : vector<8x8xf32>
    %61 = tpu.matmul %60, %48, %cst_29 {dimension_numbers = #tpu.dot_dimension_numbers<[1], [0], [0], [1], [0, 0, 1, 1], [], []>} : vector<8x8xf32>, vector<8x8xf32>, vector<8x8xf32> -> vector<8x8xf32>
    %62 = vector.extract_strided_slice %13 {offsets = [0, 24], sizes = [8, 8], strides = [1, 1]} : vector<16x96xf32> to vector<8x8xf32>
    %63 = vector.extract_strided_slice %13 {offsets = [0, 56], sizes = [8, 8], strides = [1, 1]} : vector<16x96xf32> to vector<8x8xf32>
    %64 = vector.extract_strided_slice %13 {offsets = [0, 88], sizes = [8, 8], strides = [1, 1]} : vector<16x96xf32> to vector<8x8xf32>
    %cst_30 = arith.constant dense<0.000000e+00> : vector<8x8xf32>
    %65 = tpu.matmul %62, %63, %cst_30 {dimension_numbers = #tpu.dot_dimension_numbers<[1], [1], [0], [0], [0, 0, 1, 0], [], []>} : vector<8x8xf32>, vector<8x8xf32>, vector<8x8xf32> -> vector<8x8xf32>
    %cst_31 = arith.constant 0.353553385 : f32
    %66 = vector.broadcast %cst_31 : f32 to vector<8x8xf32>
    %67 = arith.mulf %65, %66 : vector<8x8xf32>
    %cst_32 = arith.constant dense<0xFF800000> : vector<8xf32>
    %68 = vector.multi_reduction <maximumf>, %67, %cst_32 [1] : vector<8x8xf32> to vector<8xf32>
    %69 = vector.shape_cast %68 : vector<8xf32> to vector<8x1xf32>
    %70 = vector.broadcast %69 : vector<8x1xf32> to vector<8x8xf32>
    %71 = arith.subf %67, %70 : vector<8x8xf32>
    %72 = math.exp %71 : vector<8x8xf32>
    %cst_33 = arith.constant dense<0.000000e+00> : vector<8xf32>
    %73 = vector.multi_reduction <add>, %72, %cst_33 [1] : vector<8x8xf32> to vector<8xf32>
    %74 = vector.shape_cast %73 : vector<8xf32> to vector<8x1xf32>
    %75 = vector.broadcast %74 : vector<8x1xf32> to vector<8x8xf32>
    %76 = arith.divf %72, %75 : vector<8x8xf32>
    %cst_34 = arith.constant dense<0.000000e+00> : vector<8x8xf32>
    %77 = tpu.matmul %76, %64, %cst_34 {dimension_numbers = #tpu.dot_dimension_numbers<[1], [0], [0], [1], [0, 0, 1, 1], [], []>} : vector<8x8xf32>, vector<8x8xf32>, vector<8x8xf32> -> vector<8x8xf32>
    %78 = tpu.concatenate %29, %45, %61, %77 in 1 : vector<8x8xf32>, vector<8x8xf32>, vector<8x8xf32>, vector<8x8xf32> -> vector<8x32xf32>
    %79 = vector.extract_strided_slice %13 {offsets = [8, 0], sizes = [8, 8], strides = [1, 1]} : vector<16x96xf32> to vector<8x8xf32>
    %80 = vector.extract_strided_slice %13 {offsets = [8, 32], sizes = [8, 8], strides = [1, 1]} : vector<16x96xf32> to vector<8x8xf32>
    %81 = vector.extract_strided_slice %13 {offsets = [8, 64], sizes = [8, 8], strides = [1, 1]} : vector<16x96xf32> to vector<8x8xf32>
    %cst_35 = arith.constant dense<0.000000e+00> : vector<8x8xf32>
    %82 = tpu.matmul %79, %80, %cst_35 {dimension_numbers = #tpu.dot_dimension_numbers<[1], [1], [0], [0], [0, 0, 1, 0], [], []>} : vector<8x8xf32>, vector<8x8xf32>, vector<8x8xf32> -> vector<8x8xf32>
    %cst_36 = arith.constant 0.353553385 : f32
    %83 = vector.broadcast %cst_36 : f32 to vector<8x8xf32>
    %84 = arith.mulf %82, %83 : vector<8x8xf32>
    %cst_37 = arith.constant dense<0xFF800000> : vector<8xf32>
    %85 = vector.multi_reduction <maximumf>, %84, %cst_37 [1] : vector<8x8xf32> to vector<8xf32>
    %86 = vector.shape_cast %85 : vector<8xf32> to vector<8x1xf32>
    %87 = vector.broadcast %86 : vector<8x1xf32> to vector<8x8xf32>
    %88 = arith.subf %84, %87 : vector<8x8xf32>
    %89 = math.exp %88 : vector<8x8xf32>
    %cst_38 = arith.constant dense<0.000000e+00> : vector<8xf32>
    %90 = vector.multi_reduction <add>, %89, %cst_38 [1] : vector<8x8xf32> to vector<8xf32>
    %91 = vector.shape_cast %90 : vector<8xf32> to vector<8x1xf32>
    %92 = vector.broadcast %91 : vector<8x1xf32> to vector<8x8xf32>
    %93 = arith.divf %89, %92 : vector<8x8xf32>
    %cst_39 = arith.constant dense<0.000000e+00> : vector<8x8xf32>
    %94 = tpu.matmul %93, %81, %cst_39 {dimension_numbers = #tpu.dot_dimension_numbers<[1], [0], [0], [1], [0, 0, 1, 1], [], []>} : vector<8x8xf32>, vector<8x8xf32>, vector<8x8xf32> -> vector<8x8xf32>
    %95 = vector.extract_strided_slice %13 {offsets = [8, 8], sizes = [8, 8], strides = [1, 1]} : vector<16x96xf32> to vector<8x8xf32>
    %96 = vector.extract_strided_slice %13 {offsets = [8, 40], sizes = [8, 8], strides = [1, 1]} : vector<16x96xf32> to vector<8x8xf32>
    %97 = vector.extract_strided_slice %13 {offsets = [8, 72], sizes = [8, 8], strides = [1, 1]} : vector<16x96xf32> to vector<8x8xf32>
    %cst_40 = arith.constant dense<0.000000e+00> : vector<8x8xf32>
    %98 = tpu.matmul %95, %96, %cst_40 {dimension_numbers = #tpu.dot_dimension_numbers<[1], [1], [0], [0], [0, 0, 1, 0], [], []>} : vector<8x8xf32>, vector<8x8xf32>, vector<8x8xf32> -> vector<8x8xf32>
    %cst_41 = arith.constant 0.353553385 : f32
    %99 = vector.broadcast %cst_41 : f32 to vector<8x8xf32>
    %100 = arith.mulf %98, %99 : vector<8x8xf32>
    %cst_42 = arith.constant dense<0xFF800000> : vector<8xf32>
    %101 = vector.multi_reduction <maximumf>, %100, %cst_42 [1] : vector<8x8xf32> to vector<8xf32>
    %102 = vector.shape_cast %101 : vector<8xf32> to vector<8x1xf32>
    %103 = vector.broadcast %102 : vector<8x1xf32> to vector<8x8xf32>
    %104 = arith.subf %100, %103 : vector<8x8xf32>
    %105 = math.exp %104 : vector<8x8xf32>
    %cst_43 = arith.constant dense<0.000000e+00> : vector<8xf32>
    %106 = vector.multi_reduction <add>, %105, %cst_43 [1] : vector<8x8xf32> to vector<8xf32>
    %107 = vector.shape_cast %106 : vector<8xf32> to vector<8x1xf32>
    %108 = vector.broadcast %107 : vector<8x1xf32> to vector<8x8xf32>
    %109 = arith.divf %105, %108 : vector<8x8xf32>
    %cst_44 = arith.constant dense<0.000000e+00> : vector<8x8xf32>
    %110 = tpu.matmul %109, %97, %cst_44 {dimension_numbers = #tpu.dot_dimension_numbers<[1], [0], [0], [1], [0, 0, 1, 1], [], []>} : vector<8x8xf32>, vector<8x8xf32>, vector<8x8xf32> -> vector<8x8xf32>
    %111 = vector.extract_strided_slice %13 {offsets = [8, 16], sizes = [8, 8], strides = [1, 1]} : vector<16x96xf32> to vector<8x8xf32>
    %112 = vector.extract_strided_slice %13 {offsets = [8, 48], sizes = [8, 8], strides = [1, 1]} : vector<16x96xf32> to vector<8x8xf32>
    %113 = vector.extract_strided_slice %13 {offsets = [8, 80], sizes = [8, 8], strides = [1, 1]} : vector<16x96xf32> to vector<8x8xf32>
    %cst_45 = arith.constant dense<0.000000e+00> : vector<8x8xf32>
    %114 = tpu.matmul %111, %112, %cst_45 {dimension_numbers = #tpu.dot_dimension_numbers<[1], [1], [0], [0], [0, 0, 1, 0], [], []>} : vector<8x8xf32>, vector<8x8xf32>, vector<8x8xf32> -> vector<8x8xf32>
    %cst_46 = arith.constant 0.353553385 : f32
    %115 = vector.broadcast %cst_46 : f32 to vector<8x8xf32>
    %116 = arith.mulf %114, %115 : vector<8x8xf32>
    %cst_47 = arith.constant dense<0xFF800000> : vector<8xf32>
    %117 = vector.multi_reduction <maximumf>, %116, %cst_47 [1] : vector<8x8xf32> to vector<8xf32>
    %118 = vector.shape_cast %117 : vector<8xf32> to vector<8x1xf32>
    %119 = vector.broadcast %118 : vector<8x1xf32> to vector<8x8xf32>
    %120 = arith.subf %116, %119 : vector<8x8xf32>
    %121 = math.exp %120 : vector<8x8xf32>
    %cst_48 = arith.constant dense<0.000000e+00> : vector<8xf32>
    %122 = vector.multi_reduction <add>, %121, %cst_48 [1] : vector<8x8xf32> to vector<8xf32>
    %123 = vector.shape_cast %122 : vector<8xf32> to vector<8x1xf32>
    %124 = vector.broadcast %123 : vector<8x1xf32> to vector<8x8xf32>
    %125 = arith.divf %121, %124 : vector<8x8xf32>
    %cst_49 = arith.constant dense<0.000000e+00> : vector<8x8xf32>
    %126 = tpu.matmul %125, %113, %cst_49 {dimension_numbers = #tpu.dot_dimension_numbers<[1], [0], [0], [1], [0, 0, 1, 1], [], []>} : vector<8x8xf32>, vector<8x8xf32>, vector<8x8xf32> -> vector<8x8xf32>
    %127 = vector.extract_strided_slice %13 {offsets = [8, 24], sizes = [8, 8], strides = [1, 1]} : vector<16x96xf32> to vector<8x8xf32>
    %128 = vector.extract_strided_slice %13 {offsets = [8, 56], sizes = [8, 8], strides = [1, 1]} : vector<16x96xf32> to vector<8x8xf32>
    %129 = vector.extract_strided_slice %13 {offsets = [8, 88], sizes = [8, 8], strides = [1, 1]} : vector<16x96xf32> to vector<8x8xf32>
    %cst_50 = arith.constant dense<0.000000e+00> : vector<8x8xf32>
    %130 = tpu.matmul %127, %128, %cst_50 {dimension_numbers = #tpu.dot_dimension_numbers<[1], [1], [0], [0], [0, 0, 1, 0], [], []>} : vector<8x8xf32>, vector<8x8xf32>, vector<8x8xf32> -> vector<8x8xf32>
    %cst_51 = arith.constant 0.353553385 : f32
    %131 = vector.broadcast %cst_51 : f32 to vector<8x8xf32>
    %132 = arith.mulf %130, %131 : vector<8x8xf32>
    %cst_52 = arith.constant dense<0xFF800000> : vector<8xf32>
    %133 = vector.multi_reduction <maximumf>, %132, %cst_52 [1] : vector<8x8xf32> to vector<8xf32>
    %134 = vector.shape_cast %133 : vector<8xf32> to vector<8x1xf32>
    %135 = vector.broadcast %134 : vector<8x1xf32> to vector<8x8xf32>
    %136 = arith.subf %132, %135 : vector<8x8xf32>
    %137 = math.exp %136 : vector<8x8xf32>
    %cst_53 = arith.constant dense<0.000000e+00> : vector<8xf32>
    %138 = vector.multi_reduction <add>, %137, %cst_53 [1] : vector<8x8xf32> to vector<8xf32>
    %139 = vector.shape_cast %138 : vector<8xf32> to vector<8x1xf32>
    %140 = vector.broadcast %139 : vector<8x1xf32> to vector<8x8xf32>
    %141 = arith.divf %137, %140 : vector<8x8xf32>
    %cst_54 = arith.constant dense<0.000000e+00> : vector<8x8xf32>
    %142 = tpu.matmul %141, %129, %cst_54 {dimension_numbers = #tpu.dot_dimension_numbers<[1], [0], [0], [1], [0, 0, 1, 1], [], []>} : vector<8x8xf32>, vector<8x8xf32>, vector<8x8xf32> -> vector<8x8xf32>
    %143 = tpu.concatenate %94, %110, %126, %142 in 1 : vector<8x8xf32>, vector<8x8xf32>, vector<8x8xf32>, vector<8x8xf32> -> vector<8x32xf32>
    %144 = tpu.concatenate %78, %143 in 0 : vector<8x32xf32>, vector<8x32xf32> -> vector<16x32xf32>
    %cst_55 = arith.constant dense<0.000000e+00> : vector<16x32xf32>
    %145 = tpu.matmul %144, %9, %cst_55 {dimension_numbers = #tpu.dot_dimension_numbers<[1], [0], [0], [1], [0, 0, 1, 1], [], []>} : vector<16x32xf32>, vector<32x32xf32>, vector<16x32xf32> -> vector<16x32xf32>
    %146 = vector.broadcast %2 : vector<1x32xf32> to vector<16x32xf32>
    %147 = arith.addf %145, %146 : vector<16x32xf32>
    %148 = arith.addf %147, %1 : vector<16x32xf32>
    %cst_56 = arith.constant dense<0.000000e+00> : vector<16xf32>
    %149 = vector.multi_reduction <add>, %148, %cst_56 [1] : vector<16x32xf32> to vector<16xf32>
    %150 = vector.shape_cast %149 : vector<16xf32> to vector<16x1xf32>
    %cst_57 = arith.constant 3.200000e+01 : f32
    %151 = vector.broadcast %cst_57 : f32 to vector<16x1xf32>
    %152 = arith.divf %150, %151 : vector<16x1xf32>
    %153 = arith.mulf %148, %148 : vector<16x32xf32>
    %cst_58 = arith.constant dense<0.000000e+00> : vector<16xf32>
    %154 = vector.multi_reduction <add>, %153, %cst_58 [1] : vector<16x32xf32> to vector<16xf32>
    %155 = vector.shape_cast %154 : vector<16xf32> to vector<16x1xf32>
    %cst_59 = arith.constant 3.200000e+01 : f32
    %156 = vector.broadcast %cst_59 : f32 to vector<16x1xf32>
    %157 = arith.divf %155, %156 : vector<16x1xf32>
    %158 = arith.mulf %152, %152 : vector<16x1xf32>
    %159 = arith.subf %157, %158 : vector<16x1xf32>
    %160 = vector.broadcast %152 : vector<16x1xf32> to vector<16x32xf32>
    %161 = arith.subf %148, %160 : vector<16x32xf32>
    %cst_60 = arith.constant 9.99999974E-6 : f32
    %162 = vector.broadcast %cst_60 : f32 to vector<16x1xf32>
    %163 = arith.addf %159, %162 : vector<16x1xf32>
    %164 = math.rsqrt %163 : vector<16x1xf32>
    %165 = vector.broadcast %164 : vector<16x1xf32> to vector<16x32xf32>
    %166 = arith.mulf %161, %165 : vector<16x32xf32>
    %167 = vector.broadcast %3 : vector<1x32xf32> to vector<16x32xf32>
    %168 = arith.mulf %166, %167 : vector<16x32xf32>
    %169 = vector.broadcast %4 : vector<1x32xf32> to vector<16x32xf32>
    %170 = arith.addf %168, %169 : vector<16x32xf32>
    %cst_61 = arith.constant dense<0.000000e+00> : vector<16x128xf32>
    %171 = tpu.matmul %170, %10, %cst_61 {dimension_numbers = #tpu.dot_dimension_numbers<[1], [0], [0], [1], [0, 0, 1, 1], [], []>} : vector<16x32xf32>, vector<32x128xf32>, vector<16x128xf32> -> vector<16x128xf32>
    %172 = vector.broadcast %8 : vector<1x128xf32> to vector<16x128xf32>
    %173 = arith.addf %171, %172 : vector<16x128xf32>
    %cst_62 = arith.constant 0.000000e+00 : f32
    %174 = vector.broadcast %cst_62 : f32 to vector<16x128xf32>
    %175 = arith.maximumf %173, %174 : vector<16x128xf32>
    %cst_63 = arith.constant dense<0.000000e+00> : vector<16x32xf32>
    %176 = tpu.matmul %175, %11, %cst_63 {dimension_numbers = #tpu.dot_dimension_numbers<[1], [1], [0], [0], [0, 0, 1, 0], [], []>} : vector<16x128xf32>, vector<32x128xf32>, vector<16x32xf32> -> vector<16x32xf32>
    %177 = vector.broadcast %5 : vector<1x32xf32> to vector<16x32xf32>
    %178 = arith.addf %176, %177 : vector<16x32xf32>
    %179 = arith.addf %170, %178 : vector<16x32xf32>
    %cst_64 = arith.constant dense<0.000000e+00> : vector<16xf32>
    %180 = vector.multi_reduction <add>, %179, %cst_64 [1] : vector<16x32xf32> to vector<16xf32>
    %181 = vector.shape_cast %180 : vector<16xf32> to vector<16x1xf32>
    %cst_65 = arith.constant 3.200000e+01 : f32
    %182 = vector.broadcast %cst_65 : f32 to vector<16x1xf32>
    %183 = arith.divf %181, %182 : vector<16x1xf32>
    %184 = arith.mulf %179, %179 : vector<16x32xf32>
    %cst_66 = arith.constant dense<0.000000e+00> : vector<16xf32>
    %185 = vector.multi_reduction <add>, %184, %cst_66 [1] : vector<16x32xf32> to vector<16xf32>
    %186 = vector.shape_cast %185 : vector<16xf32> to vector<16x1xf32>
    %cst_67 = arith.constant 3.200000e+01 : f32
    %187 = vector.broadcast %cst_67 : f32 to vector<16x1xf32>
    %188 = arith.divf %186, %187 : vector<16x1xf32>
    %189 = arith.mulf %183, %183 : vector<16x1xf32>
    %190 = arith.subf %188, %189 : vector<16x1xf32>
    %191 = vector.broadcast %183 : vector<16x1xf32> to vector<16x32xf32>
    %192 = arith.subf %179, %191 : vector<16x32xf32>
    %cst_68 = arith.constant 9.99999974E-6 : f32
    %193 = vector.broadcast %cst_68 : f32 to vector<16x1xf32>
    %194 = arith.addf %190, %193 : vector<16x1xf32>
    %195 = math.rsqrt %194 : vector<16x1xf32>
    %196 = vector.broadcast %195 : vector<16x1xf32> to vector<16x32xf32>
    %197 = arith.mulf %192, %196 : vector<16x32xf32>
    %198 = vector.broadcast %6 : vector<1x32xf32> to vector<16x32xf32>
    %199 = arith.mulf %197, %198 : vector<16x32xf32>
    %200 = vector.broadcast %7 : vector<1x32xf32> to vector<16x32xf32>
    %201 = arith.addf %199, %200 : vector<16x32xf32>
    %c0_69 = arith.constant 0 : index
    %c0_70 = arith.constant 0 : index
    %202 = vector.load %arg5[%c0_69, %c0_70] : memref<16x32xf32, #tpu.memory_space<vmem>>, vector<16x32xf32>
    tpu.vector_store %arg5[%c0_69, %c0_70], %201 {strides = array<i32>} : memref<16x32xf32, #tpu.memory_space<vmem>>, vector<16x32xf32>,
    return
  }
  func.func @transform_0(%arg0: i32) -> (i32, i32) {
    %c0_i32 = arith.constant 0 : i32
    %c0_i32_0 = arith.constant 0 : i32
    %c0_i32_1 = arith.constant 0 : i32
    return %c0_i32, %c0_i32_0 : i32, i32
  }
  func.func @transform_1(%arg0: i32) -> (i32, i32) {
    %c0_i32 = arith.constant 0 : i32
    %c0_i32_0 = arith.constant 0 : i32
    %c0_i32_1 = arith.constant 0 : i32
    return %c0_i32, %c0_i32_0 : i32, i32
  }
  func.func @transform_2(%arg0: i32) -> (i32, i32) {
    %c0_i32 = arith.constant 0 : i32
    %c0_i32_0 = arith.constant 0 : i32
    %c0_i32_1 = arith.constant 0 : i32
    return %c0_i32, %c0_i32_0 : i32, i32
  }
  func.func @transform_3(%arg0: i32) -> (i32, i32) {
    %c0_i32 = arith.constant 0 : i32
    %c0_i32_0 = arith.constant 0 : i32
    %c0_i32_1 = arith.constant 0 : i32
    return %c0_i32, %c0_i32_0 : i32, i32
  }
  func.func @transform_4(%arg0: i32) -> (i32, i32) {
    %c0_i32 = arith.constant 0 : i32
    %c0_i32_0 = arith.constant 0 : i32
    %c0_i32_1 = arith.constant 0 : i32
    return %c0_i32, %c0_i32_0 : i32, i32
  }
}

</mosaic_0001>

<llo_original>
// kernel: encoder_block.1
$region0: #{encoder_block.1}
  #allocation0 [shape = 'u32[]', space=smem, size = 0x4, offset = 0x4, fixed_abs, tag = 'smem constant byte address 0x4 - core index']
  #allocation1 [shape = 'u32[144,128]{1,0:T(1,128)}', space=vmem, size = 0x12000, scoped, tag = 'internal scratch']
  %s0 = inlined_call_operand.vmem [shape: f32[16,96], index: 0, kind: input, shape index: {}]
  %s1 = inlined_call_operand.hbm [shape: f32[96,96], index: 1, kind: input, shape index: {}]
  %s2 = inlined_call_operand.hbm [shape: f32[96,128], index: 2, kind: input, shape index: {}]
  %s3 = inlined_call_operand.vmem [shape: f32[7,128], index: 3, kind: input, shape index: {}]
  %s4 = inlined_call_operand.hbm [shape: f32[16,32], index: 4, kind: output, shape index: {}]
  %s5 = sld [smem:[#allocation0]]
  $region34: #{encoder_block.1} parent=0
    _
  %s7 = ssub.s32 1, %s5
  %s8 = scalar_select 0, %s7, %s5
  $region1: #{encoder_block.1} parent=0
    #allocation2 [shape = 'u8[49152]{0}', space=vmem, size = 0xc000, scoped, tag = 'input window, operand 1, single buffered']
    #allocation3 [shape = 's32[1]{0}', space=sflag, size = 0x4, scoped, tag = 'scoped memory for encoder_block.1']
    #allocation4 [shape = 's32[1]{0}', space=sflag, size = 0x4, scoped, tag = 'scoped memory for encoder_block.1']
    #allocation5 [shape = 'u8[49152]{0}', space=vmem, size = 0xc000, scoped, tag = 'input window, operand 2, single buffered']
    #allocation6 [shape = 's32[1]{0}', space=sflag, size = 0x4, scoped, tag = 'scoped memory for encoder_block.1']
    #allocation7 [shape = 'u8[8192]{0}', space=vmem, size = 0x2000, scoped, tag = 'output window, operand 0, single buffered']
    %9 = vsyncpa [#allocation3], 0
    %10 = vsyncpa [#allocation6], 0
    %11 = vsyncpa [#allocation4], 0
    // Predicated region
    $region2: #{encoder_block.1} parent=1 // pred_check
      _
    $region3: #{encoder_block.1} parent=1 // pred_check_branch
      %13 = sbr.rel (0) target = $region5
    $region4: #{encoder_block.1} parent=1 // pred_region
      _
    $region5: #{encoder_block.1} parent=1 // pred_fallthru
      _
    // Predicated region
    $region6: #{encoder_block.1} parent=1 // pred_check
      _
    $region7: #{encoder_block.1} parent=1 // pred_check_branch
      %15 = sbr.rel (0) target = $region9
    $region8: #{encoder_block.1} parent=1 // pred_region
      %s17 = ssub.s32 1536, 1536
      %18 = vsyncadd [#allocation3], %s17
      %s19 = sshll.u32 [#allocation2], 4
      %s20 = int_to_ptr.vmem [resolvable:$true] %s19
      %25 = dma.hbm_to_vmem [thread:$0]  %s1, 1536, %s20, [#allocation3], 128, 128, 8
    $region9: #{encoder_block.1} parent=1 // pred_fallthru
      _
    // Predicated region
    $region10: #{encoder_block.1} parent=1 // pred_check
      _
    $region11: #{encoder_block.1} parent=1 // pred_check_branch
      %27 = sbr.rel (0) target = $region13
    $region12: #{encoder_block.1} parent=1 // pred_region
      %s29 = ssub.s32 1536, 1536
      %30 = vsyncadd [#allocation6], %s29
      %s31 = sshll.u32 [#allocation5], 4
      %s32 = int_to_ptr.vmem [resolvable:$true] %s31
      %37 = dma.hbm_to_vmem [thread:$0]  %s2, 1536, %s32, [#allocation6], 128, 128, 8
    $region13: #{encoder_block.1} parent=1 // pred_fallthru
      _
    // Predicated region
    $region14: #{encoder_block.1} parent=1 // pred_check
      _
    $region15: #{encoder_block.1} parent=1 // pred_check_branch
      %39 = sbr.rel (0) target = $region17
    $region16: #{encoder_block.1} parent=1 // pred_region
      _
    $region17: #{encoder_block.1} parent=1 // pred_fallthru
      _
    // Predicated region
    $region18: #{encoder_block.1} parent=1 // pred_check
      _
    $region19: #{encoder_block.1} parent=1 // pred_check_branch
      %41 = sbr.rel (0) target = $region21
    $region20: #{encoder_block.1} parent=1 // pred_region
      %42 = dma.done [#allocation3], 1536
    $region21: #{encoder_block.1} parent=1 // pred_fallthru
      _
    // Predicated region
    $region22: #{encoder_block.1} parent=1 // pred_check
      _
    $region23: #{encoder_block.1} parent=1 // pred_check_branch
      %44 = sbr.rel (0) target = $region25
    $region24: #{encoder_block.1} parent=1 // pred_region
      %45 = dma.done [#allocation6], 1536
    $region25: #{encoder_block.1} parent=1 // pred_fallthru
      _
    %v46 = vld [vmem:[%s0] sm:$0xff]
    %v47 = vld [vmem:[%s0 + $0x8] sm:$0xff]
    %v48 = vld [vmem:[%s3] sm:$0x1]
    %v49 = vld [vmem:[%s3 + $0x1] sm:$0x1]
    %v50 = vld [vmem:[%s3 + $0x2] sm:$0x1]
    %v51 = vld [vmem:[%s3 + $0x3] sm:$0x1]
    %v52 = vld [vmem:[%s3 + $0x4] sm:$0x1]
    %v53 = vld [vmem:[%s3 + $0x5] sm:$0x1]
    %v54 = vld [vmem:[%s3 + $0x6] sm:$0x1]
    %v55 = vld [vmem:[#allocation5] sm:$0xff]
    %v56 = vld [vmem:[#allocation5 + $0x8] sm:$0xff]
    %v57 = vld [vmem:[#allocation5 + $0x10] sm:$0xff]
    %v58 = vld [vmem:[#allocation5 + $0x18] sm:$0xff]
    %v59 = vld [vmem:[#allocation5 + $0x20] sm:$0xff]
    %v60 = vld [vmem:[#allocation5 + $0x28] sm:$0xff]
    %v61 = vld [vmem:[#allocation5 + $0x30] sm:$0xff]
    %v62 = vld [vmem:[#allocation5 + $0x38] sm:$0xff]
    %v63 = vld [vmem:[#allocation5 + $0x40] sm:$0xff]
    %v64 = vld [vmem:[#allocation5 + $0x48] sm:$0xff]
    %v65 = vld [vmem:[#allocation5 + $0x50] sm:$0xff]
    %v66 = vld [vmem:[#allocation5 + $0x58] sm:$0xff]
    %v67 = vld [vmem:[#allocation2] sm:$0xff]
    %v68 = vld [vmem:[#allocation2 + $0x8] sm:$0xff]
    %v69 = vld [vmem:[#allocation2 + $0x10] sm:$0xff]
    %v70 = vld [vmem:[#allocation2 + $0x18] sm:$0xff]
    %v71 = vld [vmem:[#allocation2 + $0x20] sm:$0xff]
    %v72 = vld [vmem:[#allocation2 + $0x28] sm:$0xff]
    %v73 = vld [vmem:[#allocation2 + $0x30] sm:$0xff]
    %v74 = vld [vmem:[#allocation2 + $0x38] sm:$0xff]
    %v75 = vld [vmem:[#allocation2 + $0x40] sm:$0xff]
    %v76 = vld [vmem:[#allocation2 + $0x48] sm:$0xff]
    %v77 = vld [vmem:[#allocation2 + $0x50] sm:$0xff]
    %v78 = vld [vmem:[#allocation2 + $0x58] sm:$0xff]
    %vm79 = vcmask 785408
    %v81 = vsel %vm79, %v46, 0
    %v84 = vsel %vm79, %v47, 0
    %86 = vmatprep.subr.mxu0 0.0
    %87 = vmatpush1.msra.mxu0 0.0
    %88 = vmatprep.subr.mxu0 0.0
    %89 = vmatpush1.msra.mxu0 0.0
    %90 = vmatprep.subr.mxu0 0.0
    %91 = vmatpush1.msra.mxu0 0.0
    %92 = vmatprep.subr.mxu0 0.0
    %93 = vmatpush1.msra.mxu0 0.0
    %94 = vmatprep.subr.mxu0 0.0
    %95 = vmatpush1.msra.mxu0 %v78
    %96 = vmatprep.subr.mxu0 0.0
    %97 = vmatpush1.msra.mxu0 %v77
    %98 = vmatprep.subr.mxu0 0.0
    %99 = vmatpush1.msra.mxu0 %v76
    %100 = vmatprep.subr.mxu0 0.0
    %101 = vmatpush1.msra.mxu0 %v75
    %102 = vmatprep.subr.mxu0 0.0
    %103 = vmatpush1.msra.mxu0 %v74
    %104 = vmatprep.subr.mxu0 0.0
    %105 = vmatpush1.msra.mxu0 %v73
    %106 = vmatprep.subr.mxu0 0.0
    %107 = vmatpush1.msra.mxu0 %v72
    %108 = vmatprep.subr.mxu0 0.0
    %109 = vmatpush1.msra.mxu0 %v71
    %110 = vmatprep.subr.mxu0 0.0
    %111 = vmatpush1.msra.mxu0 %v70
    %112 = vmatprep.subr.mxu0 0.0
    %113 = vmatpush1.msra.mxu0 %v69
    %114 = vmatprep.subr.mxu0 0.0
    %115 = vmatpush1.msra.mxu0 %v68
    %116 = vmatprep.subr.mxu0 0.0
    %117 = vmatpush1.msra.mxu0 %v67
    %118 = vmatprep.subr.mxu0 0.0
    %119 = vmatpush2.msra.mxu0 0.0
    %120 = vmatprep.subr.mxu0 0.0
    %121 = vmatpush2.msra.mxu0 0.0
    %122 = vmatprep.subr.mxu0 0.0
    %123 = vmatpush2.msra.mxu0 0.0
    %124 = vmatprep.subr.mxu0 0.0
    %125 = vmatpush2.msra.mxu0 0.0
    %126 = vmatprep.subr.mxu0 0.0
    %127 = vmatpush2.msra.mxu0 0.0
    %128 = vmatprep.subr.mxu0 0.0
    %129 = vmatpush2.msra.mxu0 0.0
    %130 = vmatprep.subr.mxu0 0.0
    %131 = vmatpush2.msra.mxu0 0.0
    %132 = vmatprep.subr.mxu0 0.0
    %133 = vmatpush2.msra.mxu0 0.0
    %134 = vmatprep.subr.mxu0 0.0
    %135 = vmatpush2.msra.mxu0 0.0
    %136 = vmatprep.subr.mxu0 0.0
    %137 = vmatpush2.msra.mxu0 0.0
    %138 = vmatprep.subr.mxu0 0.0
    %139 = vmatpush2.msra.mxu0 0.0
    %140 = vmatprep.subr.mxu0 0.0
    %141 = vmatpush2.msra.mxu0 0.0
    %142 = vmatprep.subr.mxu0 0.0
    %143 = vmatpush2.msra.mxu0 0.0
    %144 = vmatprep.subr.mxu0 0.0
    %145 = vmatpush2.msra.mxu0 0.0
    %146 = vmatprep.subr.mxu0 0.0
    %147 = vmatpush2.msra.mxu0 0.0
    %148 = vmatprep.subr.mxu0 0.0
    %149 = vmatpush2.msra.mxu0 0.0
    %150 = vmatprep.mubr.f32.mxu0 0.0
    %151 = vmatmul.mubr.f32.gmra.mxu0 %v81
    %v152 = vpop.f32.mrf.mxu0
    %v153 = vadd.f32 0.0, %v152
    %v154 = vpop.f32.mrf.mxu0
    %155 = vmatprep.mubr.f32.mxu0 0.0
    %156 = vmatmul.mubr.f32.gmra.mxu0 %v84
    %v157 = vpop.f32.mrf.mxu0
    %v158 = vadd.f32 0.0, %v157
    %v159 = vpop.f32.mrf.mxu0
    %160 = vdwg.mxu0
    %162 = vrot.lane.b32.xlu0 %v153, 96
    %v163 = vpop.permute.xlu0 %162
    %vm164 = vcmask 64512
    %v165 = vsel %vm164, %v153, 0
    %v167 = vsel %vm164, %v163, 0
    %169 = vmatprep.subr.mxu0 0.0
    %170 = vmatpush1.xpose.msra.mxu0 0.0
    %171 = vmatprep.subr.mxu0 0.0
    %172 = vmatpush1.xpose.msra.mxu0 0.0
    %173 = vmatprep.subr.mxu0 0.0
    %174 = vmatpush1.xpose.msra.mxu0 0.0
    %175 = vmatprep.subr.mxu0 0.0
    %176 = vmatpush1.xpose.msra.mxu0 0.0
    %177 = vmatprep.subr.mxu0 0.0
    %178 = vmatpush1.xpose.msra.mxu0 0.0
    %179 = vmatprep.subr.mxu0 0.0
    %180 = vmatpush1.xpose.msra.mxu0 0.0
    %181 = vmatprep.subr.mxu0 0.0
    %182 = vmatpush1.xpose.msra.mxu0 0.0
    %183 = vmatprep.subr.mxu0 0.0
    %184 = vmatpush1.xpose.msra.mxu0 0.0
    %185 = vmatprep.subr.mxu0 0.0
    %186 = vmatpush1.xpose.msra.mxu0 0.0
    %187 = vmatprep.subr.mxu0 0.0
    %188 = vmatpush1.xpose.msra.mxu0 0.0
    %189 = vmatprep.subr.mxu0 0.0
    %190 = vmatpush1.xpose.msra.mxu0 0.0
    %191 = vmatprep.subr.mxu0 0.0
    %192 = vmatpush1.xpose.msra.mxu0 0.0
    %193 = vmatprep.subr.mxu0 0.0
    %194 = vmatpush1.xpose.msra.mxu0 0.0
    %195 = vmatprep.subr.mxu0 0.0
    %196 = vmatpush1.xpose.msra.mxu0 0.0
    %197 = vmatprep.subr.mxu0 0.0
    %198 = vmatpush1.xpose.msra.mxu0 0.0
    %199 = vmatprep.subr.mxu0 0.0
    %200 = vmatpush1.xpose.msra.mxu0 %v167
    %201 = vmatprep.subr.mxu0 0.0
    %202 = vmatpush2.xpose.msra.mxu0 0.0
    %203 = vmatprep.subr.mxu0 0.0
    %204 = vmatpush2.xpose.msra.mxu0 0.0
    %205 = vmatprep.subr.mxu0 0.0
    %206 = vmatpush2.xpose.msra.mxu0 0.0
    %207 = vmatprep.subr.mxu0 0.0
    %208 = vmatpush2.xpose.msra.mxu0 0.0
    %209 = vmatprep.subr.mxu0 0.0
    %210 = vmatpush2.xpose.msra.mxu0 0.0
    %211 = vmatprep.subr.mxu0 0.0
    %212 = vmatpush2.xpose.msra.mxu0 0.0
    %213 = vmatprep.subr.mxu0 0.0
    %214 = vmatpush2.xpose.msra.mxu0 0.0
    %215 = vmatprep.subr.mxu0 0.0
    %216 = vmatpush2.xpose.msra.mxu0 0.0
    %217 = vmatprep.subr.mxu0 0.0
    %218 = vmatpush2.xpose.msra.mxu0 0.0
    %219 = vmatprep.subr.mxu0 0.0
    %220 = vmatpush2.xpose.msra.mxu0 0.0
    %221 = vmatprep.subr.mxu0 0.0
    %222 = vmatpush2.xpose.msra.mxu0 0.0
    %223 = vmatprep.subr.mxu0 0.0
    %224 = vmatpush2.xpose.msra.mxu0 0.0
    %225 = vmatprep.subr.mxu0 0.0
    %226 = vmatpush2.xpose.msra.mxu0 0.0
    %227 = vmatprep.subr.mxu0 0.0
    %228 = vmatpush2.xpose.msra.mxu0 0.0
    %229 = vmatprep.subr.mxu0 0.0
    %230 = vmatpush2.xpose.msra.mxu0 0.0
    %231 = vmatprep.subr.mxu0 0.0
    %232 = vmatpush2.xpose.msra.mxu0 0.0
    %233 = vmatprep.mubr.f32.mxu0 0.0
    %234 = vmatmul.mubr.f32.gmra.mxu0 %v165
    %v235 = vpop.f32.mrf.mxu0
    %v236 = vadd.f32 0.0, %v235
    %v237 = vpop.f32.mrf.mxu0
    %238 = vdwg.mxu0
    %v239 = vmul.f32 %v236, 0.35355338
    %v240 = vsel %vm164, %v239, -inf
    %241 = vmax.xlane.f32.xlu0 %v240
    %v242 = vpop.xlane.xlu0 %241
    %v243 = vsub.f32 %v239, %v242
    %v244 = vmul.f32 %v243, 1.442695
    %v245 = vpow.pop %v244
    %v246 = vsel %vm164, %v245, 0.0
    %247 = vadd.xlane.f32.xlu0 %v246
    %v248 = vpop.xlane.xlu0 %247
    %v249 = vrcp.pop %v248
    %v250 = vmul.f32 %v245, %v249
    %251 = vrot.lane.b32.xlu0 %v153, 64
    %v252 = vpop.permute.xlu0 %251
    %v255 = vsel %vm164, %v250, 0
    %257 = vmatprep.subr.mxu0 0.0
    %258 = vmatpush1.msra.mxu0 0.0
    %259 = vmatprep.subr.mxu0 0.0
    %260 = vmatpush1.msra.mxu0 0.0
    %261 = vmatprep.subr.mxu0 0.0
    %262 = vmatpush1.msra.mxu0 0.0
    %263 = vmatprep.subr.mxu0 0.0
    %264 = vmatpush1.msra.mxu0 0.0
    %265 = vmatprep.subr.mxu0 0.0
    %266 = vmatpush1.msra.mxu0 0.0
    %267 = vmatprep.subr.mxu0 0.0
    %268 = vmatpush1.msra.mxu0 0.0
    %269 = vmatprep.subr.mxu0 0.0
    %270 = vmatpush1.msra.mxu0 0.0
    %271 = vmatprep.subr.mxu0 0.0
    %272 = vmatpush1.msra.mxu0 0.0
    %273 = vmatprep.subr.mxu0 0.0
    %274 = vmatpush1.msra.mxu0 0.0
    %275 = vmatprep.subr.mxu0 0.0
    %276 = vmatpush1.msra.mxu0 0.0
    %277 = vmatprep.subr.mxu0 0.0
    %278 = vmatpush1.msra.mxu0 0.0
    %279 = vmatprep.subr.mxu0 0.0
    %280 = vmatpush1.msra.mxu0 0.0
    %281 = vmatprep.subr.mxu0 0.0
    %282 = vmatpush1.msra.mxu0 0.0
    %283 = vmatprep.subr.mxu0 0.0
    %284 = vmatpush1.msra.mxu0 0.0
    %285 = vmatprep.subr.mxu0 0.0
    %286 = vmatpush1.msra.mxu0 0.0
    %287 = vmatprep.subr.mxu0 0.0
    %288 = vmatpush1.msra.mxu0 %v252
    %289 = vmatprep.subr.mxu0 0.0
    %290 = vmatpush2.msra.mxu0 0.0
    %291 = vmatprep.subr.mxu0 0.0
    %292 = vmatpush2.msra.mxu0 0.0
    %293 = vmatprep.subr.mxu0 0.0
    %294 = vmatpush2.msra.mxu0 0.0
    %295 = vmatprep.subr.mxu0 0.0
    %296 = vmatpush2.msra.mxu0 0.0
    %297 = vmatprep.subr.mxu0 0.0
    %298 = vmatpush2.msra.mxu0 0.0
    %299 = vmatprep.subr.mxu0 0.0
    %300 = vmatpush2.msra.mxu0 0.0
    %301 = vmatprep.subr.mxu0 0.0
    %302 = vmatpush2.msra.mxu0 0.0
    %303 = vmatprep.subr.mxu0 0.0
    %304 = vmatpush2.msra.mxu0 0.0
    %305 = vmatprep.subr.mxu0 0.0
    %306 = vmatpush2.msra.mxu0 0.0
    %307 = vmatprep.subr.mxu0 0.0
    %308 = vmatpush2.msra.mxu0 0.0
    %309 = vmatprep.subr.mxu0 0.0
    %310 = vmatpush2.msra.mxu0 0.0
    %311 = vmatprep.subr.mxu0 0.0
    %312 = vmatpush2.msra.mxu0 0.0
    %313 = vmatprep.subr.mxu0 0.0
    %314 = vmatpush2.msra.mxu0 0.0
    %315 = vmatprep.subr.mxu0 0.0
    %316 = vmatpush2.msra.mxu0 0.0
    %317 = vmatprep.subr.mxu0 0.0
    %318 = vmatpush2.msra.mxu0 0.0
    %319 = vmatprep.subr.mxu0 0.0
    %320 = vmatpush2.msra.mxu0 0.0
    %321 = vmatprep.mubr.f32.mxu0 0.0
    %322 = vmatmul.mubr.f32.gmra.mxu0 %v255
    %v323 = vpop.f32.mrf.mxu0
    %v324 = vadd.f32 0.0, %v323
    %v325 = vpop.f32.mrf.mxu0
    %326 = vdwg.mxu0
    %327 = vrot.lane.b32.xlu0 %v153, 120
    %v328 = vpop.permute.xlu0 %327
    %329 = vrot.lane.b32.xlu0 %v153, 88
    %v330 = vpop.permute.xlu0 %329
    %v331 = vsel %vm164, %v328, 0
    %v333 = vsel %vm164, %v330, 0
    %335 = vmatprep.subr.mxu0 0.0
    %336 = vmatpush1.xpose.msra.mxu0 0.0
    %337 = vmatprep.subr.mxu0 0.0
    %338 = vmatpush1.xpose.msra.mxu0 0.0
    %339 = vmatprep.subr.mxu0 0.0
    %340 = vmatpush1.xpose.msra.mxu0 0.0
    %341 = vmatprep.subr.mxu0 0.0
    %342 = vmatpush1.xpose.msra.mxu0 0.0
    %343 = vmatprep.subr.mxu0 0.0
    %344 = vmatpush1.xpose.msra.mxu0 0.0
    %345 = vmatprep.subr.mxu0 0.0
    %346 = vmatpush1.xpose.msra.mxu0 0.0
    %347 = vmatprep.subr.mxu0 0.0
    %348 = vmatpush1.xpose.msra.mxu0 0.0
    %349 = vmatprep.subr.mxu0 0.0
    %350 = vmatpush1.xpose.msra.mxu0 0.0
    %351 = vmatprep.subr.mxu0 0.0
    %352 = vmatpush1.xpose.msra.mxu0 0.0
    %353 = vmatprep.subr.mxu0 0.0
    %354 = vmatpush1.xpose.msra.mxu0 0.0
    %355 = vmatprep.subr.mxu0 0.0
    %356 = vmatpush1.xpose.msra.mxu0 0.0
    %357 = vmatprep.subr.mxu0 0.0
    %358 = vmatpush1.xpose.msra.mxu0 0.0
    %359 = vmatprep.subr.mxu0 0.0
    %360 = vmatpush1.xpose.msra.mxu0 0.0
    %361 = vmatprep.subr.mxu0 0.0
    %362 = vmatpush1.xpose.msra.mxu0 0.0
    %363 = vmatprep.subr.mxu0 0.0
    %364 = vmatpush1.xpose.msra.mxu0 0.0
    %365 = vmatprep.subr.mxu0 0.0
    %366 = vmatpush1.xpose.msra.mxu0 %v333
    %367 = vmatprep.subr.mxu0 0.0
    %368 = vmatpush2.xpose.msra.mxu0 0.0
    %369 = vmatprep.subr.mxu0 0.0
    %370 = vmatpush2.xpose.msra.mxu0 0.0
    %371 = vmatprep.subr.mxu0 0.0
    %372 = vmatpush2.xpose.msra.mxu0 0.0
    %373 = vmatprep.subr.mxu0 0.0
    %374 = vmatpush2.xpose.msra.mxu0 0.0
    %375 = vmatprep.subr.mxu0 0.0
    %376 = vmatpush2.xpose.msra.mxu0 0.0
    %377 = vmatprep.subr.mxu0 0.0
    %378 = vmatpush2.xpose.msra.mxu0 0.0
    %379 = vmatprep.subr.mxu0 0.0
    %380 = vmatpush2.xpose.msra.mxu0 0.0
    %381 = vmatprep.subr.mxu0 0.0
    %382 = vmatpush2.xpose.msra.mxu0 0.0
    %383 = vmatprep.subr.mxu0 0.0
    %384 = vmatpush2.xpose.msra.mxu0 0.0
    %385 = vmatprep.subr.mxu0 0.0
    %386 = vmatpush2.xpose.msra.mxu0 0.0
    %387 = vmatprep.subr.mxu0 0.0
    %388 = vmatpush2.xpose.msra.mxu0 0.0
    %389 = vmatprep.subr.mxu0 0.0
    %390 = vmatpush2.xpose.msra.mxu0 0.0
    %391 = vmatprep.subr.mxu0 0.0
    %392 = vmatpush2.xpose.msra.mxu0 0.0
    %393 = vmatprep.subr.mxu0 0.0
    %394 = vmatpush2.xpose.msra.mxu0 0.0
    %395 = vmatprep.subr.mxu0 0.0
    %396 = vmatpush2.xpose.msra.mxu0 0.0
    %397 = vmatprep.subr.mxu0 0.0
    %398 = vmatpush2.xpose.msra.mxu0 0.0
    %399 = vmatprep.mubr.f32.mxu0 0.0
    %400 = vmatmul.mubr.f32.gmra.mxu0 %v331
    %v401 = vpop.f32.mrf.mxu0
    %v402 = vadd.f32 0.0, %v401
    %v403 = vpop.f32.mrf.mxu0
    %404 = vdwg.mxu0
    %v405 = vmul.f32 %v402, 0.35355338
    %v406 = vsel %vm164, %v405, -inf
    %407 = vmax.xlane.f32.xlu0 %v406
    %v408 = vpop.xlane.xlu0 %407
    %v409 = vsub.f32 %v405, %v408
    %v410 = vmul.f32 %v409, 1.442695
    %v411 = vpow.pop %v410
    %v412 = vsel %vm164, %v411, 0.0
    %413 = vadd.xlane.f32.xlu0 %v412
    %v414 = vpop.xlane.xlu0 %413
    %v415 = vrcp.pop %v414
    %v416 = vmul.f32 %v411, %v415
    %417 = vrot.lane.b32.xlu0 %v153, 56
    %v418 = vpop.permute.xlu0 %417
    %v421 = vsel %vm164, %v416, 0
    %423 = vmatprep.subr.mxu0 0.0
    %424 = vmatpush1.msra.mxu0 0.0
    %425 = vmatprep.subr.mxu0 0.0
    %426 = vmatpush1.msra.mxu0 0.0
    %427 = vmatprep.subr.mxu0 0.0
    %428 = vmatpush1.msra.mxu0 0.0
    %429 = vmatprep.subr.mxu0 0.0
    %430 = vmatpush1.msra.mxu0 0.0
    %431 = vmatprep.subr.mxu0 0.0
    %432 = vmatpush1.msra.mxu0 0.0
    %433 = vmatprep.subr.mxu0 0.0
    %434 = vmatpush1.msra.mxu0 0.0
    %435 = vmatprep.subr.mxu0 0.0
    %436 = vmatpush1.msra.mxu0 0.0
    %437 = vmatprep.subr.mxu0 0.0
    %438 = vmatpush1.msra.mxu0 0.0
    %439 = vmatprep.subr.mxu0 0.0
    %440 = vmatpush1.msra.mxu0 0.0
    %441 = vmatprep.subr.mxu0 0.0
    %442 = vmatpush1.msra.mxu0 0.0
    %443 = vmatprep.subr.mxu0 0.0
    %444 = vmatpush1.msra.mxu0 0.0
    %445 = vmatprep.subr.mxu0 0.0
    %446 = vmatpush1.msra.mxu0 0.0
    %447 = vmatprep.subr.mxu0 0.0
    %448 = vmatpush1.msra.mxu0 0.0
    %449 = vmatprep.subr.mxu0 0.0
    %450 = vmatpush1.msra.mxu0 0.0
    %451 = vmatprep.subr.mxu0 0.0
    %452 = vmatpush1.msra.mxu0 0.0
    %453 = vmatprep.subr.mxu0 0.0
    %454 = vmatpush1.msra.mxu0 %v418
    %455 = vmatprep.subr.mxu0 0.0
    %456 = vmatpush2.msra.mxu0 0.0
    %457 = vmatprep.subr.mxu0 0.0
    %458 = vmatpush2.msra.mxu0 0.0
    %459 = vmatprep.subr.mxu0 0.0
    %460 = vmatpush2.msra.mxu0 0.0
    %461 = vmatprep.subr.mxu0 0.0
    %462 = vmatpush2.msra.mxu0 0.0
    %463 = vmatprep.subr.mxu0 0.0
    %464 = vmatpush2.msra.mxu0 0.0
    %465 = vmatprep.subr.mxu0 0.0
    %466 = vmatpush2.msra.mxu0 0.0
    %467 = vmatprep.subr.mxu0 0.0
    %468 = vmatpush2.msra.mxu0 0.0
    %469 = vmatprep.subr.mxu0 0.0
    %470 = vmatpush2.msra.mxu0 0.0
    %471 = vmatprep.subr.mxu0 0.0
    %472 = vmatpush2.msra.mxu0 0.0
    %473 = vmatprep.subr.mxu0 0.0
    %474 = vmatpush2.msra.mxu0 0.0
    %475 = vmatprep.subr.mxu0 0.0
    %476 = vmatpush2.msra.mxu0 0.0
    %477 = vmatprep.subr.mxu0 0.0
    %478 = vmatpush2.msra.mxu0 0.0
    %479 = vmatprep.subr.mxu0 0.0
    %480 = vmatpush2.msra.mxu0 0.0
    %481 = vmatprep.subr.mxu0 0.0
    %482 = vmatpush2.msra.mxu0 0.0
    %483 = vmatprep.subr.mxu0 0.0
    %484 = vmatpush2.msra.mxu0 0.0
    %485 = vmatprep.subr.mxu0 0.0
    %486 = vmatpush2.msra.mxu0 0.0
    %487 = vmatprep.mubr.f32.mxu0 0.0
    %488 = vmatmul.mubr.f32.gmra.mxu0 %v421
    %v489 = vpop.f32.mrf.mxu0
    %v490 = vadd.f32 0.0, %v489
    %v491 = vpop.f32.mrf.mxu0
    %492 = vdwg.mxu0
    %493 = vrot.lane.b32.xlu0 %v153, 112
    %v494 = vpop.permute.xlu0 %493
    %495 = vrot.lane.b32.xlu0 %v153, 80
    %v496 = vpop.permute.xlu0 %495
    %v497 = vsel %vm164, %v494, 0
    %v499 = vsel %vm164, %v496, 0
    %501 = vmatprep.subr.mxu0 0.0
    %502 = vmatpush1.xpose.msra.mxu0 0.0
    %503 = vmatprep.subr.mxu0 0.0
    %504 = vmatpush1.xpose.msra.mxu0 0.0
    %505 = vmatprep.subr.mxu0 0.0
    %506 = vmatpush1.xpose.msra.mxu0 0.0
    %507 = vmatprep.subr.mxu0 0.0
    %508 = vmatpush1.xpose.msra.mxu0 0.0
    %509 = vmatprep.subr.mxu0 0.0
    %510 = vmatpush1.xpose.msra.mxu0 0.0
    %511 = vmatprep.subr.mxu0 0.0
    %512 = vmatpush1.xpose.msra.mxu0 0.0
    %513 = vmatprep.subr.mxu0 0.0
    %514 = vmatpush1.xpose.msra.mxu0 0.0
    %515 = vmatprep.subr.mxu0 0.0
    %516 = vmatpush1.xpose.msra.mxu0 0.0
    %517 = vmatprep.subr.mxu0 0.0
    %518 = vmatpush1.xpose.msra.mxu0 0.0
    %519 = vmatprep.subr.mxu0 0.0
    %520 = vmatpush1.xpose.msra.mxu0 0.0
    %521 = vmatprep.subr.mxu0 0.0
    %522 = vmatpush1.xpose.msra.mxu0 0.0
    %523 = vmatprep.subr.mxu0 0.0
    %524 = vmatpush1.xpose.msra.mxu0 0.0
    %525 = vmatprep.subr.mxu0 0.0
    %526 = vmatpush1.xpose.msra.mxu0 0.0
    %527 = vmatprep.subr.mxu0 0.0
    %528 = vmatpush1.xpose.msra.mxu0 0.0
    %529 = vmatprep.subr.mxu0 0.0
    %530 = vmatpush1.xpose.msra.mxu0 0.0
    %531 = vmatprep.subr.mxu0 0.0
    %532 = vmatpush1.xpose.msra.mxu0 %v499
    %533 = vmatprep.subr.mxu0 0.0
    %534 = vmatpush2.xpose.msra.mxu0 0.0
    %535 = vmatprep.subr.mxu0 0.0
    %536 = vmatpush2.xpose.msra.mxu0 0.0
    %537 = vmatprep.subr.mxu0 0.0
    %538 = vmatpush2.xpose.msra.mxu0 0.0
    %539 = vmatprep.subr.mxu0 0.0
    %540 = vmatpush2.xpose.msra.mxu0 0.0
    %541 = vmatprep.subr.mxu0 0.0
    %542 = vmatpush2.xpose.msra.mxu0 0.0
    %543 = vmatprep.subr.mxu0 0.0
    %544 = vmatpush2.xpose.msra.mxu0 0.0
    %545 = vmatprep.subr.mxu0 0.0
    %546 = vmatpush2.xpose.msra.mxu0 0.0
    %547 = vmatprep.subr.mxu0 0.0
    %548 = vmatpush2.xpose.msra.mxu0 0.0
    %549 = vmatprep.subr.mxu0 0.0
    %550 = vmatpush2.xpose.msra.mxu0 0.0
    %551 = vmatprep.subr.mxu0 0.0
    %552 = vmatpush2.xpose.msra.mxu0 0.0
    %553 = vmatprep.subr.mxu0 0.0
    %554 = vmatpush2.xpose.msra.mxu0 0.0
    %555 = vmatprep.subr.mxu0 0.0
    %556 = vmatpush2.xpose.msra.mxu0 0.0
    %557 = vmatprep.subr.mxu0 0.0
    %558 = vmatpush2.xpose.msra.mxu0 0.0
    %559 = vmatprep.subr.mxu0 0.0
    %560 = vmatpush2.xpose.msra.mxu0 0.0
    %561 = vmatprep.subr.mxu0 0.0
    %562 = vmatpush2.xpose.msra.mxu0 0.0
    %563 = vmatprep.subr.mxu0 0.0
    %564 = vmatpush2.xpose.msra.mxu0 0.0
    %565 = vmatprep.mubr.f32.mxu0 0.0
    %566 = vmatmul.mubr.f32.gmra.mxu0 %v497
    %v567 = vpop.f32.mrf.mxu0
    %v568 = vadd.f32 0.0, %v567
    %v569 = vpop.f32.mrf.mxu0
    %570 = vdwg.mxu0
    %v571 = vmul.f32 %v568, 0.35355338
    %v572 = vsel %vm164, %v571, -inf
    %573 = vmax.xlane.f32.xlu0 %v572
    %v574 = vpop.xlane.xlu0 %573
    %v575 = vsub.f32 %v571, %v574
    %v576 = vmul.f32 %v575, 1.442695
    %v577 = vpow.pop %v576
    %v578 = vsel %vm164, %v577, 0.0
    %579 = vadd.xlane.f32.xlu0 %v578
    %v580 = vpop.xlane.xlu0 %579
    %v581 = vrcp.pop %v580
    %v582 = vmul.f32 %v577, %v581
    %583 = vrot.lane.b32.xlu0 %v153, 48
    %v584 = vpop.permute.xlu0 %583
    %v587 = vsel %vm164, %v582, 0
    %589 = vmatprep.subr.mxu0 0.0
    %590 = vmatpush1.msra.mxu0 0.0
    %591 = vmatprep.subr.mxu0 0.0
    %592 = vmatpush1.msra.mxu0 0.0
    %593 = vmatprep.subr.mxu0 0.0
    %594 = vmatpush1.msra.mxu0 0.0
    %595 = vmatprep.subr.mxu0 0.0
    %596 = vmatpush1.msra.mxu0 0.0
    %597 = vmatprep.subr.mxu0 0.0
    %598 = vmatpush1.msra.mxu0 0.0
    %599 = vmatprep.subr.mxu0 0.0
    %600 = vmatpush1.msra.mxu0 0.0
    %601 = vmatprep.subr.mxu0 0.0
    %602 = vmatpush1.msra.mxu0 0.0
    %603 = vmatprep.subr.mxu0 0.0
    %604 = vmatpush1.msra.mxu0 0.0
    %605 = vmatprep.subr.mxu0 0.0
    %606 = vmatpush1.msra.mxu0 0.0
    %607 = vmatprep.subr.mxu0 0.0
    %608 = vmatpush1.msra.mxu0 0.0
    %609 = vmatprep.subr.mxu0 0.0
    %610 = vmatpush1.msra.mxu0 0.0
    %611 = vmatprep.subr.mxu0 0.0
    %612 = vmatpush1.msra.mxu0 0.0
    %613 = vmatprep.subr.mxu0 0.0
    %614 = vmatpush1.msra.mxu0 0.0
    %615 = vmatprep.subr.mxu0 0.0
    %616 = vmatpush1.msra.mxu0 0.0
    %617 = vmatprep.subr.mxu0 0.0
    %618 = vmatpush1.msra.mxu0 0.0
    %619 = vmatprep.subr.mxu0 0.0
    %620 = vmatpush1.msra.mxu0 %v584
    %621 = vmatprep.subr.mxu0 0.0
    %622 = vmatpush2.msra.mxu0 0.0
    %623 = vmatprep.subr.mxu0 0.0
    %624 = vmatpush2.msra.mxu0 0.0
    %625 = vmatprep.subr.mxu0 0.0
    %626 = vmatpush2.msra.mxu0 0.0
    %627 = vmatprep.subr.mxu0 0.0
    %628 = vmatpush2.msra.mxu0 0.0
    %629 = vmatprep.subr.mxu0 0.0
    %630 = vmatpush2.msra.mxu0 0.0
    %631 = vmatprep.subr.mxu0 0.0
    %632 = vmatpush2.msra.mxu0 0.0
    %633 = vmatprep.subr.mxu0 0.0
    %634 = vmatpush2.msra.mxu0 0.0
    %635 = vmatprep.subr.mxu0 0.0
    %636 = vmatpush2.msra.mxu0 0.0
    %637 = vmatprep.subr.mxu0 0.0
    %638 = vmatpush2.msra.mxu0 0.0
    %639 = vmatprep.subr.mxu0 0.0
    %640 = vmatpush2.msra.mxu0 0.0
    %641 = vmatprep.subr.mxu0 0.0
    %642 = vmatpush2.msra.mxu0 0.0
    %643 = vmatprep.subr.mxu0 0.0
    %644 = vmatpush2.msra.mxu0 0.0
    %645 = vmatprep.subr.mxu0 0.0
    %646 = vmatpush2.msra.mxu0 0.0
    %647 = vmatprep.subr.mxu0 0.0
    %648 = vmatpush2.msra.mxu0 0.0
    %649 = vmatprep.subr.mxu0 0.0
    %650 = vmatpush2.msra.mxu0 0.0
    %651 = vmatprep.subr.mxu0 0.0
    %652 = vmatpush2.msra.mxu0 0.0
    %653 = vmatprep.mubr.f32.mxu0 0.0
    %654 = vmatmul.mubr.f32.gmra.mxu0 %v587
    %v655 = vpop.f32.mrf.mxu0
    %v656 = vadd.f32 0.0, %v655
    %v657 = vpop.f32.mrf.mxu0
    %658 = vdwg.mxu0
    %659 = vrot.lane.b32.xlu0 %v153, 104
    %v660 = vpop.permute.xlu0 %659
    %661 = vrot.lane.b32.xlu0 %v153, 72
    %v662 = vpop.permute.xlu0 %661
    %v663 = vsel %vm164, %v660, 0
    %v665 = vsel %vm164, %v662, 0
    %667 = vmatprep.subr.mxu0 0.0
    %668 = vmatpush1.xpose.msra.mxu0 0.0
    %669 = vmatprep.subr.mxu0 0.0
    %670 = vmatpush1.xpose.msra.mxu0 0.0
    %671 = vmatprep.subr.mxu0 0.0
    %672 = vmatpush1.xpose.msra.mxu0 0.0
    %673 = vmatprep.subr.mxu0 0.0
    %674 = vmatpush1.xpose.msra.mxu0 0.0
    %675 = vmatprep.subr.mxu0 0.0
    %676 = vmatpush1.xpose.msra.mxu0 0.0
    %677 = vmatprep.subr.mxu0 0.0
    %678 = vmatpush1.xpose.msra.mxu0 0.0
    %679 = vmatprep.subr.mxu0 0.0
    %680 = vmatpush1.xpose.msra.mxu0 0.0
    %681 = vmatprep.subr.mxu0 0.0
    %682 = vmatpush1.xpose.msra.mxu0 0.0
    %683 = vmatprep.subr.mxu0 0.0
    %684 = vmatpush1.xpose.msra.mxu0 0.0
    %685 = vmatprep.subr.mxu0 0.0
    %686 = vmatpush1.xpose.msra.mxu0 0.0
    %687 = vmatprep.subr.mxu0 0.0
    %688 = vmatpush1.xpose.msra.mxu0 0.0
    %689 = vmatprep.subr.mxu0 0.0
    %690 = vmatpush1.xpose.msra.mxu0 0.0
    %691 = vmatprep.subr.mxu0 0.0
    %692 = vmatpush1.xpose.msra.mxu0 0.0
    %693 = vmatprep.subr.mxu0 0.0
    %694 = vmatpush1.xpose.msra.mxu0 0.0
    %695 = vmatprep.subr.mxu0 0.0
    %696 = vmatpush1.xpose.msra.mxu0 0.0
    %697 = vmatprep.subr.mxu0 0.0
    %698 = vmatpush1.xpose.msra.mxu0 %v665
    %699 = vmatprep.subr.mxu0 0.0
    %700 = vmatpush2.xpose.msra.mxu0 0.0
    %701 = vmatprep.subr.mxu0 0.0
    %702 = vmatpush2.xpose.msra.mxu0 0.0
    %703 = vmatprep.subr.mxu0 0.0
    %704 = vmatpush2.xpose.msra.mxu0 0.0
    %705 = vmatprep.subr.mxu0 0.0
    %706 = vmatpush2.xpose.msra.mxu0 0.0
    %707 = vmatprep.subr.mxu0 0.0
    %708 = vmatpush2.xpose.msra.mxu0 0.0
    %709 = vmatprep.subr.mxu0 0.0
    %710 = vmatpush2.xpose.msra.mxu0 0.0
    %711 = vmatprep.subr.mxu0 0.0
    %712 = vmatpush2.xpose.msra.mxu0 0.0
    %713 = vmatprep.subr.mxu0 0.0
    %714 = vmatpush2.xpose.msra.mxu0 0.0
    %715 = vmatprep.subr.mxu0 0.0
    %716 = vmatpush2.xpose.msra.mxu0 0.0
    %717 = vmatprep.subr.mxu0 0.0
    %718 = vmatpush2.xpose.msra.mxu0 0.0
    %719 = vmatprep.subr.mxu0 0.0
    %720 = vmatpush2.xpose.msra.mxu0 0.0
    %721 = vmatprep.subr.mxu0 0.0
    %722 = vmatpush2.xpose.msra.mxu0 0.0
    %723 = vmatprep.subr.mxu0 0.0
    %724 = vmatpush2.xpose.msra.mxu0 0.0
    %725 = vmatprep.subr.mxu0 0.0
    %726 = vmatpush2.xpose.msra.mxu0 0.0
    %727 = vmatprep.subr.mxu0 0.0
    %728 = vmatpush2.xpose.msra.mxu0 0.0
    %729 = vmatprep.subr.mxu0 0.0
    %730 = vmatpush2.xpose.msra.mxu0 0.0
    %731 = vmatprep.mubr.f32.mxu0 0.0
    %732 = vmatmul.mubr.f32.gmra.mxu0 %v663
    %v733 = vpop.f32.mrf.mxu0
    %v734 = vadd.f32 0.0, %v733
    %v735 = vpop.f32.mrf.mxu0
    %736 = vdwg.mxu0
    %v737 = vmul.f32 %v734, 0.35355338
    %v738 = vsel %vm164, %v737, -inf
    %739 = vmax.xlane.f32.xlu0 %v738
    %v740 = vpop.xlane.xlu0 %739
    %v741 = vsub.f32 %v737, %v740
    %v742 = vmul.f32 %v741, 1.442695
    %v743 = vpow.pop %v742
    %v744 = vsel %vm164, %v743, 0.0
    %745 = vadd.xlane.f32.xlu0 %v744
    %v746 = vpop.xlane.xlu0 %745
    %v747 = vrcp.pop %v746
    %v748 = vmul.f32 %v743, %v747
    %749 = vrot.lane.b32.xlu0 %v153, 40
    %v750 = vpop.permute.xlu0 %749
    %v753 = vsel %vm164, %v748, 0
    %755 = vmatprep.subr.mxu0 0.0
    %756 = vmatpush1.msra.mxu0 0.0
    %757 = vmatprep.subr.mxu0 0.0
    %758 = vmatpush1.msra.mxu0 0.0
    %759 = vmatprep.subr.mxu0 0.0
    %760 = vmatpush1.msra.mxu0 0.0
    %761 = vmatprep.subr.mxu0 0.0
    %762 = vmatpush1.msra.mxu0 0.0
    %763 = vmatprep.subr.mxu0 0.0
    %764 = vmatpush1.msra.mxu0 0.0
    %765 = vmatprep.subr.mxu0 0.0
    %766 = vmatpush1.msra.mxu0 0.0
    %767 = vmatprep.subr.mxu0 0.0
    %768 = vmatpush1.msra.mxu0 0.0
    %769 = vmatprep.subr.mxu0 0.0
    %770 = vmatpush1.msra.mxu0 0.0
    %771 = vmatprep.subr.mxu0 0.0
    %772 = vmatpush1.msra.mxu0 0.0
    %773 = vmatprep.subr.mxu0 0.0
    %774 = vmatpush1.msra.mxu0 0.0
    %775 = vmatprep.subr.mxu0 0.0
    %776 = vmatpush1.msra.mxu0 0.0
    %777 = vmatprep.subr.mxu0 0.0
    %778 = vmatpush1.msra.mxu0 0.0
    %779 = vmatprep.subr.mxu0 0.0
    %780 = vmatpush1.msra.mxu0 0.0
    %781 = vmatprep.subr.mxu0 0.0
    %782 = vmatpush1.msra.mxu0 0.0
    %783 = vmatprep.subr.mxu0 0.0
    %784 = vmatpush1.msra.mxu0 0.0
    %785 = vmatprep.subr.mxu0 0.0
    %786 = vmatpush1.msra.mxu0 %v750
    %787 = vmatprep.subr.mxu0 0.0
    %788 = vmatpush2.msra.mxu0 0.0
    %789 = vmatprep.subr.mxu0 0.0
    %790 = vmatpush2.msra.mxu0 0.0
    %791 = vmatprep.subr.mxu0 0.0
    %792 = vmatpush2.msra.mxu0 0.0
    %793 = vmatprep.subr.mxu0 0.0
    %794 = vmatpush2.msra.mxu0 0.0
    %795 = vmatprep.subr.mxu0 0.0
    %796 = vmatpush2.msra.mxu0 0.0
    %797 = vmatprep.subr.mxu0 0.0
    %798 = vmatpush2.msra.mxu0 0.0
    %799 = vmatprep.subr.mxu0 0.0
    %800 = vmatpush2.msra.mxu0 0.0
    %801 = vmatprep.subr.mxu0 0.0
    %802 = vmatpush2.msra.mxu0 0.0
    %803 = vmatprep.subr.mxu0 0.0
    %804 = vmatpush2.msra.mxu0 0.0
    %805 = vmatprep.subr.mxu0 0.0
    %806 = vmatpush2.msra.mxu0 0.0
    %807 = vmatprep.subr.mxu0 0.0
    %808 = vmatpush2.msra.mxu0 0.0
    %809 = vmatprep.subr.mxu0 0.0
    %810 = vmatpush2.msra.mxu0 0.0
    %811 = vmatprep.subr.mxu0 0.0
    %812 = vmatpush2.msra.mxu0 0.0
    %813 = vmatprep.subr.mxu0 0.0
    %814 = vmatpush2.msra.mxu0 0.0
    %815 = vmatprep.subr.mxu0 0.0
    %816 = vmatpush2.msra.mxu0 0.0
    %817 = vmatprep.subr.mxu0 0.0
    %818 = vmatpush2.msra.mxu0 0.0
    %819 = vmatprep.mubr.f32.mxu0 0.0
    %820 = vmatmul.mubr.f32.gmra.mxu0 %v753
    %v821 = vpop.f32.mrf.mxu0
    %v822 = vadd.f32 0.0, %v821
    %v823 = vpop.f32.mrf.mxu0
    %824 = vdwg.mxu0
    %826 = vrot.lane.b32.xlu0 %v490, 8
    %v827 = vpop.permute.xlu0 %826
    %830 = vrot.lane.b32.xlu0 %v656, 16
    %v831 = vpop.permute.xlu0 %830
    %834 = vrot.lane.b32.xlu0 %v822, 24
    %v835 = vpop.permute.xlu0 %834
    %v837 = vsel %vm164, %v324, %v827
    %vm838 = vcmask 130048
    %v839 = vsel %vm838, %v837, %v831
    %vm840 = vcmask 195584
    %v841 = vsel %vm840, %v839, %v835
    %843 = vrot.lane.b32.xlu0 %v158, 96
    %v844 = vpop.permute.xlu0 %843
    %v845 = vsel %vm164, %v158, 0
    %v847 = vsel %vm164, %v844, 0
    %849 = vmatprep.subr.mxu0 0.0
    %850 = vmatpush1.xpose.msra.mxu0 0.0
    %851 = vmatprep.subr.mxu0 0.0
    %852 = vmatpush1.xpose.msra.mxu0 0.0
    %853 = vmatprep.subr.mxu0 0.0
    %854 = vmatpush1.xpose.msra.mxu0 0.0
    %855 = vmatprep.subr.mxu0 0.0
    %856 = vmatpush1.xpose.msra.mxu0 0.0
    %857 = vmatprep.subr.mxu0 0.0
    %858 = vmatpush1.xpose.msra.mxu0 0.0
    %859 = vmatprep.subr.mxu0 0.0
    %860 = vmatpush1.xpose.msra.mxu0 0.0
    %861 = vmatprep.subr.mxu0 0.0
    %862 = vmatpush1.xpose.msra.mxu0 0.0
    %863 = vmatprep.subr.mxu0 0.0
    %864 = vmatpush1.xpose.msra.mxu0 0.0
    %865 = vmatprep.subr.mxu0 0.0
    %866 = vmatpush1.xpose.msra.mxu0 0.0
    %867 = vmatprep.subr.mxu0 0.0
    %868 = vmatpush1.xpose.msra.mxu0 0.0
    %869 = vmatprep.subr.mxu0 0.0
    %870 = vmatpush1.xpose.msra.mxu0 0.0
    %871 = vmatprep.subr.mxu0 0.0
    %872 = vmatpush1.xpose.msra.mxu0 0.0
    %873 = vmatprep.subr.mxu0 0.0
    %874 = vmatpush1.xpose.msra.mxu0 0.0
    %875 = vmatprep.subr.mxu0 0.0
    %876 = vmatpush1.xpose.msra.mxu0 0.0
    %877 = vmatprep.subr.mxu0 0.0
    %878 = vmatpush1.xpose.msra.mxu0 0.0
    %879 = vmatprep.subr.mxu0 0.0
    %880 = vmatpush1.xpose.msra.mxu0 %v847
    %881 = vmatprep.subr.mxu0 0.0
    %882 = vmatpush2.xpose.msra.mxu0 0.0
    %883 = vmatprep.subr.mxu0 0.0
    %884 = vmatpush2.xpose.msra.mxu0 0.0
    %885 = vmatprep.subr.mxu0 0.0
    %886 = vmatpush2.xpose.msra.mxu0 0.0
    %887 = vmatprep.subr.mxu0 0.0
    %888 = vmatpush2.xpose.msra.mxu0 0.0
    %889 = vmatprep.subr.mxu0 0.0
    %890 = vmatpush2.xpose.msra.mxu0 0.0
    %891 = vmatprep.subr.mxu0 0.0
    %892 = vmatpush2.xpose.msra.mxu0 0.0
    %893 = vmatprep.subr.mxu0 0.0
    %894 = vmatpush2.xpose.msra.mxu0 0.0
    %895 = vmatprep.subr.mxu0 0.0
    %896 = vmatpush2.xpose.msra.mxu0 0.0
    %897 = vmatprep.subr.mxu0 0.0
    %898 = vmatpush2.xpose.msra.mxu0 0.0
    %899 = vmatprep.subr.mxu0 0.0
    %900 = vmatpush2.xpose.msra.mxu0 0.0
    %901 = vmatprep.subr.mxu0 0.0
    %902 = vmatpush2.xpose.msra.mxu0 0.0
    %903 = vmatprep.subr.mxu0 0.0
    %904 = vmatpush2.xpose.msra.mxu0 0.0
    %905 = vmatprep.subr.mxu0 0.0
    %906 = vmatpush2.xpose.msra.mxu0 0.0
    %907 = vmatprep.subr.mxu0 0.0
    %908 = vmatpush2.xpose.msra.mxu0 0.0
    %909 = vmatprep.subr.mxu0 0.0
    %910 = vmatpush2.xpose.msra.mxu0 0.0
    %911 = vmatprep.subr.mxu0 0.0
    %912 = vmatpush2.xpose.msra.mxu0 0.0
    %913 = vmatprep.mubr.f32.mxu0 0.0
    %914 = vmatmul.mubr.f32.gmra.mxu0 %v845
    %v915 = vpop.f32.mrf.mxu0
    %v916 = vadd.f32 0.0, %v915
    %v917 = vpop.f32.mrf.mxu0
    %918 = vdwg.mxu0
    %v919 = vmul.f32 %v916, 0.35355338
    %v920 = vsel %vm164, %v919, -inf
    %921 = vmax.xlane.f32.xlu0 %v920
    %v922 = vpop.xlane.xlu0 %921
    %v923 = vsub.f32 %v919, %v922
    %v924 = vmul.f32 %v923, 1.442695
    %v925 = vpow.pop %v924
    %v926 = vsel %vm164, %v925, 0.0
    %927 = vadd.xlane.f32.xlu0 %v926
    %v928 = vpop.xlane.xlu0 %927
    %v929 = vrcp.pop %v928
    %v930 = vmul.f32 %v925, %v929
    %931 = vrot.lane.b32.xlu0 %v158, 64
    %v932 = vpop.permute.xlu0 %931
    %v935 = vsel %vm164, %v930, 0
    %937 = vmatprep.subr.mxu0 0.0
    %938 = vmatpush1.msra.mxu0 0.0
    %939 = vmatprep.subr.mxu0 0.0
    %940 = vmatpush1.msra.mxu0 0.0
    %941 = vmatprep.subr.mxu0 0.0
    %942 = vmatpush1.msra.mxu0 0.0
    %943 = vmatprep.subr.mxu0 0.0
    %944 = vmatpush1.msra.mxu0 0.0
    %945 = vmatprep.subr.mxu0 0.0
    %946 = vmatpush1.msra.mxu0 0.0
    %947 = vmatprep.subr.mxu0 0.0
    %948 = vmatpush1.msra.mxu0 0.0
    %949 = vmatprep.subr.mxu0 0.0
    %950 = vmatpush1.msra.mxu0 0.0
    %951 = vmatprep.subr.mxu0 0.0
    %952 = vmatpush1.msra.mxu0 0.0
    %953 = vmatprep.subr.mxu0 0.0
    %954 = vmatpush1.msra.mxu0 0.0
    %955 = vmatprep.subr.mxu0 0.0
    %956 = vmatpush1.msra.mxu0 0.0
    %957 = vmatprep.subr.mxu0 0.0
    %958 = vmatpush1.msra.mxu0 0.0
    %959 = vmatprep.subr.mxu0 0.0
    %960 = vmatpush1.msra.mxu0 0.0
    %961 = vmatprep.subr.mxu0 0.0
    %962 = vmatpush1.msra.mxu0 0.0
    %963 = vmatprep.subr.mxu0 0.0
    %964 = vmatpush1.msra.mxu0 0.0
    %965 = vmatprep.subr.mxu0 0.0
    %966 = vmatpush1.msra.mxu0 0.0
    %967 = vmatprep.subr.mxu0 0.0
    %968 = vmatpush1.msra.mxu0 %v932
    %969 = vmatprep.subr.mxu0 0.0
    %970 = vmatpush2.msra.mxu0 0.0
    %971 = vmatprep.subr.mxu0 0.0
    %972 = vmatpush2.msra.mxu0 0.0
    %973 = vmatprep.subr.mxu0 0.0
    %974 = vmatpush2.msra.mxu0 0.0
    %975 = vmatprep.subr.mxu0 0.0
    %976 = vmatpush2.msra.mxu0 0.0
    %977 = vmatprep.subr.mxu0 0.0
    %978 = vmatpush2.msra.mxu0 0.0
    %979 = vmatprep.subr.mxu0 0.0
    %980 = vmatpush2.msra.mxu0 0.0
    %981 = vmatprep.subr.mxu0 0.0
    %982 = vmatpush2.msra.mxu0 0.0
    %983 = vmatprep.subr.mxu0 0.0
    %984 = vmatpush2.msra.mxu0 0.0
    %985 = vmatprep.subr.mxu0 0.0
    %986 = vmatpush2.msra.mxu0 0.0
    %987 = vmatprep.subr.mxu0 0.0
    %988 = vmatpush2.msra.mxu0 0.0
    %989 = vmatprep.subr.mxu0 0.0
    %990 = vmatpush2.msra.mxu0 0.0
    %991 = vmatprep.subr.mxu0 0.0
    %992 = vmatpush2.msra.mxu0 0.0
    %993 = vmatprep.subr.mxu0 0.0
    %994 = vmatpush2.msra.mxu0 0.0
    %995 = vmatprep.subr.mxu0 0.0
    %996 = vmatpush2.msra.mxu0 0.0
    %997 = vmatprep.subr.mxu0 0.0
    %998 = vmatpush2.msra.mxu0 0.0
    %999 = vmatprep.subr.mxu0 0.0
    %1000 = vmatpush2.msra.mxu0 0.0
    %1001 = vmatprep.mubr.f32.mxu0 0.0
    %1002 = vmatmul.mubr.f32.gmra.mxu0 %v935
    %v1003 = vpop.f32.mrf.mxu0
    %v1004 = vadd.f32 0.0, %v1003
    %v1005 = vpop.f32.mrf.mxu0
    %1006 = vdwg.mxu0
    %1007 = vrot.lane.b32.xlu0 %v158, 120
    %v1008 = vpop.permute.xlu0 %1007
    %1009 = vrot.lane.b32.xlu0 %v158, 88
    %v1010 = vpop.permute.xlu0 %1009
    %v1011 = vsel %vm164, %v1008, 0
    %v1013 = vsel %vm164, %v1010, 0
    %1015 = vmatprep.subr.mxu0 0.0
    %1016 = vmatpush1.xpose.msra.mxu0 0.0
    %1017 = vmatprep.subr.mxu0 0.0
    %1018 = vmatpush1.xpose.msra.mxu0 0.0
    %1019 = vmatprep.subr.mxu0 0.0
    %1020 = vmatpush1.xpose.msra.mxu0 0.0
    %1021 = vmatprep.subr.mxu0 0.0
    %1022 = vmatpush1.xpose.msra.mxu0 0.0
    %1023 = vmatprep.subr.mxu0 0.0
    %1024 = vmatpush1.xpose.msra.mxu0 0.0
    %1025 = vmatprep.subr.mxu0 0.0
    %1026 = vmatpush1.xpose.msra.mxu0 0.0
    %1027 = vmatprep.subr.mxu0 0.0
    %1028 = vmatpush1.xpose.msra.mxu0 0.0
    %1029 = vmatprep.subr.mxu0 0.0
    %1030 = vmatpush1.xpose.msra.mxu0 0.0
    %1031 = vmatprep.subr.mxu0 0.0
    %1032 = vmatpush1.xpose.msra.mxu0 0.0
    %1033 = vmatprep.subr.mxu0 0.0
    %1034 = vmatpush1.xpose.msra.mxu0 0.0
    %1035 = vmatprep.subr.mxu0 0.0
    %1036 = vmatpush1.xpose.msra.mxu0 0.0
    %1037 = vmatprep.subr.mxu0 0.0
    %1038 = vmatpush1.xpose.msra.mxu0 0.0
    %1039 = vmatprep.subr.mxu0 0.0
    %1040 = vmatpush1.xpose.msra.mxu0 0.0
    %1041 = vmatprep.subr.mxu0 0.0
    %1042 = vmatpush1.xpose.msra.mxu0 0.0
    %1043 = vmatprep.subr.mxu0 0.0
    %1044 = vmatpush1.xpose.msra.mxu0 0.0
    %1045 = vmatprep.subr.mxu0 0.0
    %1046 = vmatpush1.xpose.msra.mxu0 %v1013
    %1047 = vmatprep.subr.mxu0 0.0
    %1048 = vmatpush2.xpose.msra.mxu0 0.0
    %1049 = vmatprep.subr.mxu0 0.0
    %1050 = vmatpush2.xpose.msra.mxu0 0.0
    %1051 = vmatprep.subr.mxu0 0.0
    %1052 = vmatpush2.xpose.msra.mxu0 0.0
    %1053 = vmatprep.subr.mxu0 0.0
    %1054 = vmatpush2.xpose.msra.mxu0 0.0
    %1055 = vmatprep.subr.mxu0 0.0
    %1056 = vmatpush2.xpose.msra.mxu0 0.0
    %1057 = vmatprep.subr.mxu0 0.0
    %1058 = vmatpush2.xpose.msra.mxu0 0.0
    %1059 = vmatprep.subr.mxu0 0.0
    %1060 = vmatpush2.xpose.msra.mxu0 0.0
    %1061 = vmatprep.subr.mxu0 0.0
    %1062 = vmatpush2.xpose.msra.mxu0 0.0
    %1063 = vmatprep.subr.mxu0 0.0
    %1064 = vmatpush2.xpose.msra.mxu0 0.0
    %1065 = vmatprep.subr.mxu0 0.0
    %1066 = vmatpush2.xpose.msra.mxu0 0.0
    %1067 = vmatprep.subr.mxu0 0.0
    %1068 = vmatpush2.xpose.msra.mxu0 0.0
    %1069 = vmatprep.subr.mxu0 0.0
    %1070 = vmatpush2.xpose.msra.mxu0 0.0
    %1071 = vmatprep.subr.mxu0 0.0
    %1072 = vmatpush2.xpose.msra.mxu0 0.0
    %1073 = vmatprep.subr.mxu0 0.0
    %1074 = vmatpush2.xpose.msra.mxu0 0.0
    %1075 = vmatprep.subr.mxu0 0.0
    %1076 = vmatpush2.xpose.msra.mxu0 0.0
    %1077 = vmatprep.subr.mxu0 0.0
    %1078 = vmatpush2.xpose.msra.mxu0 0.0
    %1079 = vmatprep.mubr.f32.mxu0 0.0
    %1080 = vmatmul.mubr.f32.gmra.mxu0 %v1011
    %v1081 = vpop.f32.mrf.mxu0
    %v1082 = vadd.f32 0.0, %v1081
    %v1083 = vpop.f32.mrf.mxu0
    %1084 = vdwg.mxu0
    %v1085 = vmul.f32 %v1082, 0.35355338
    %v1086 = vsel %vm164, %v1085, -inf
    %1087 = vmax.xlane.f32.xlu0 %v1086
    %v1088 = vpop.xlane.xlu0 %1087
    %v1089 = vsub.f32 %v1085, %v1088
    %v1090 = vmul.f32 %v1089, 1.442695
    %v1091 = vpow.pop %v1090
    %v1092 = vsel %vm164, %v1091, 0.0
    %1093 = vadd.xlane.f32.xlu0 %v1092
    %v1094 = vpop.xlane.xlu0 %1093
    %v1095 = vrcp.pop %v1094
    %v1096 = vmul.f32 %v1091, %v1095
    %1097 = vrot.lane.b32.xlu0 %v158, 56
    %v1098 = vpop.permute.xlu0 %1097
    %v1101 = vsel %vm164, %v1096, 0
    %1103 = vmatprep.subr.mxu0 0.0
    %1104 = vmatpush1.msra.mxu0 0.0
    %1105 = vmatprep.subr.mxu0 0.0
    %1106 = vmatpush1.msra.mxu0 0.0
    %1107 = vmatprep.subr.mxu0 0.0
    %1108 = vmatpush1.msra.mxu0 0.0
    %1109 = vmatprep.subr.mxu0 0.0
    %1110 = vmatpush1.msra.mxu0 0.0
    %1111 = vmatprep.subr.mxu0 0.0
    %1112 = vmatpush1.msra.mxu0 0.0
    %1113 = vmatprep.subr.mxu0 0.0
    %1114 = vmatpush1.msra.mxu0 0.0
    %1115 = vmatprep.subr.mxu0 0.0
    %1116 = vmatpush1.msra.mxu0 0.0
    %1117 = vmatprep.subr.mxu0 0.0
    %1118 = vmatpush1.msra.mxu0 0.0
    %1119 = vmatprep.subr.mxu0 0.0
    %1120 = vmatpush1.msra.mxu0 0.0
    %1121 = vmatprep.subr.mxu0 0.0
    %1122 = vmatpush1.msra.mxu0 0.0
    %1123 = vmatprep.subr.mxu0 0.0
    %1124 = vmatpush1.msra.mxu0 0.0
    %1125 = vmatprep.subr.mxu0 0.0
    %1126 = vmatpush1.msra.mxu0 0.0
    %1127 = vmatprep.subr.mxu0 0.0
    %1128 = vmatpush1.msra.mxu0 0.0
    %1129 = vmatprep.subr.mxu0 0.0
    %1130 = vmatpush1.msra.mxu0 0.0
    %1131 = vmatprep.subr.mxu0 0.0
    %1132 = vmatpush1.msra.mxu0 0.0
    %1133 = vmatprep.subr.mxu0 0.0
    %1134 = vmatpush1.msra.mxu0 %v1098
    %1135 = vmatprep.subr.mxu0 0.0
    %1136 = vmatpush2.msra.mxu0 0.0
    %1137 = vmatprep.subr.mxu0 0.0
    %1138 = vmatpush2.msra.mxu0 0.0
    %1139 = vmatprep.subr.mxu0 0.0
    %1140 = vmatpush2.msra.mxu0 0.0
    %1141 = vmatprep.subr.mxu0 0.0
    %1142 = vmatpush2.msra.mxu0 0.0
    %1143 = vmatprep.subr.mxu0 0.0
    %1144 = vmatpush2.msra.mxu0 0.0
    %1145 = vmatprep.subr.mxu0 0.0
    %1146 = vmatpush2.msra.mxu0 0.0
    %1147 = vmatprep.subr.mxu0 0.0
    %1148 = vmatpush2.msra.mxu0 0.0
    %1149 = vmatprep.subr.mxu0 0.0
    %1150 = vmatpush2.msra.mxu0 0.0
    %1151 = vmatprep.subr.mxu0 0.0
    %1152 = vmatpush2.msra.mxu0 0.0
    %1153 = vmatprep.subr.mxu0 0.0
    %1154 = vmatpush2.msra.mxu0 0.0
    %1155 = vmatprep.subr.mxu0 0.0
    %1156 = vmatpush2.msra.mxu0 0.0
    %1157 = vmatprep.subr.mxu0 0.0
    %1158 = vmatpush2.msra.mxu0 0.0
    %1159 = vmatprep.subr.mxu0 0.0
    %1160 = vmatpush2.msra.mxu0 0.0
    %1161 = vmatprep.subr.mxu0 0.0
    %1162 = vmatpush2.msra.mxu0 0.0
    %1163 = vmatprep.subr.mxu0 0.0
    %1164 = vmatpush2.msra.mxu0 0.0
    %1165 = vmatprep.subr.mxu0 0.0
    %1166 = vmatpush2.msra.mxu0 0.0
    %1167 = vmatprep.mubr.f32.mxu0 0.0
    %1168 = vmatmul.mubr.f32.gmra.mxu0 %v1101
    %v1169 = vpop.f32.mrf.mxu0
    %v1170 = vadd.f32 0.0, %v1169
    %v1171 = vpop.f32.mrf.mxu0
    %1172 = vdwg.mxu0
    %1173 = vrot.lane.b32.xlu0 %v158, 112
    %v1174 = vpop.permute.xlu0 %1173
    %1175 = vrot.lane.b32.xlu0 %v158, 80
    %v1176 = vpop.permute.xlu0 %1175
    %v1177 = vsel %vm164, %v1174, 0
    %v1179 = vsel %vm164, %v1176, 0
    %1181 = vmatprep.subr.mxu0 0.0
    %1182 = vmatpush1.xpose.msra.mxu0 0.0
    %1183 = vmatprep.subr.mxu0 0.0
    %1184 = vmatpush1.xpose.msra.mxu0 0.0
    %1185 = vmatprep.subr.mxu0 0.0
    %1186 = vmatpush1.xpose.msra.mxu0 0.0
    %1187 = vmatprep.subr.mxu0 0.0
    %1188 = vmatpush1.xpose.msra.mxu0 0.0
    %1189 = vmatprep.subr.mxu0 0.0
    %1190 = vmatpush1.xpose.msra.mxu0 0.0
    %1191 = vmatprep.subr.mxu0 0.0
    %1192 = vmatpush1.xpose.msra.mxu0 0.0
    %1193 = vmatprep.subr.mxu0 0.0
    %1194 = vmatpush1.xpose.msra.mxu0 0.0
    %1195 = vmatprep.subr.mxu0 0.0
    %1196 = vmatpush1.xpose.msra.mxu0 0.0
    %1197 = vmatprep.subr.mxu0 0.0
    %1198 = vmatpush1.xpose.msra.mxu0 0.0
    %1199 = vmatprep.subr.mxu0 0.0
    %1200 = vmatpush1.xpose.msra.mxu0 0.0
    %1201 = vmatprep.subr.mxu0 0.0
    %1202 = vmatpush1.xpose.msra.mxu0 0.0
    %1203 = vmatprep.subr.mxu0 0.0
    %1204 = vmatpush1.xpose.msra.mxu0 0.0
    %1205 = vmatprep.subr.mxu0 0.0
    %1206 = vmatpush1.xpose.msra.mxu0 0.0
    %1207 = vmatprep.subr.mxu0 0.0
    %1208 = vmatpush1.xpose.msra.mxu0 0.0
    %1209 = vmatprep.subr.mxu0 0.0
    %1210 = vmatpush1.xpose.msra.mxu0 0.0
    %1211 = vmatprep.subr.mxu0 0.0
    %1212 = vmatpush1.xpose.msra.mxu0 %v1179
    %1213 = vmatprep.subr.mxu0 0.0
    %1214 = vmatpush2.xpose.msra.mxu0 0.0
    %1215 = vmatprep.subr.mxu0 0.0
    %1216 = vmatpush2.xpose.msra.mxu0 0.0
    %1217 = vmatprep.subr.mxu0 0.0
    %1218 = vmatpush2.xpose.msra.mxu0 0.0
    %1219 = vmatprep.subr.mxu0 0.0
    %1220 = vmatpush2.xpose.msra.mxu0 0.0
    %1221 = vmatprep.subr.mxu0 0.0
    %1222 = vmatpush2.xpose.msra.mxu0 0.0
    %1223 = vmatprep.subr.mxu0 0.0
    %1224 = vmatpush2.xpose.msra.mxu0 0.0
    %1225 = vmatprep.subr.mxu0 0.0
    %1226 = vmatpush2.xpose.msra.mxu0 0.0
    %1227 = vmatprep.subr.mxu0 0.0
    %1228 = vmatpush2.xpose.msra.mxu0 0.0
    %1229 = vmatprep.subr.mxu0 0.0
    %1230 = vmatpush2.xpose.msra.mxu0 0.0
    %1231 = vmatprep.subr.mxu0 0.0
    %1232 = vmatpush2.xpose.msra.mxu0 0.0
    %1233 = vmatprep.subr.mxu0 0.0
    %1234 = vmatpush2.xpose.msra.mxu0 0.0
    %1235 = vmatprep.subr.mxu0 0.0
    %1236 = vmatpush2.xpose.msra.mxu0 0.0
    %1237 = vmatprep.subr.mxu0 0.0
    %1238 = vmatpush2.xpose.msra.mxu0 0.0
    %1239 = vmatprep.subr.mxu0 0.0
    %1240 = vmatpush2.xpose.msra.mxu0 0.0
    %1241 = vmatprep.subr.mxu0 0.0
    %1242 = vmatpush2.xpose.msra.mxu0 0.0
    %1243 = vmatprep.subr.mxu0 0.0
    %1244 = vmatpush2.xpose.msra.mxu0 0.0
    %1245 = vmatprep.mubr.f32.mxu0 0.0
    %1246 = vmatmul.mubr.f32.gmra.mxu0 %v1177
    %v1247 = vpop.f32.mrf.mxu0
    %v1248 = vadd.f32 0.0, %v1247
    %v1249 = vpop.f32.mrf.mxu0
    %1250 = vdwg.mxu0
    %v1251 = vmul.f32 %v1248, 0.35355338
    %v1252 = vsel %vm164, %v1251, -inf
    %1253 = vmax.xlane.f32.xlu0 %v1252
    %v1254 = vpop.xlane.xlu0 %1253
    %v1255 = vsub.f32 %v1251, %v1254
    %v1256 = vmul.f32 %v1255, 1.442695
    %v1257 = vpow.pop %v1256
    %v1258 = vsel %vm164, %v1257, 0.0
    %1259 = vadd.xlane.f32.xlu0 %v1258
    %v1260 = vpop.xlane.xlu0 %1259
    %v1261 = vrcp.pop %v1260
    %v1262 = vmul.f32 %v1257, %v1261
    %1263 = vrot.lane.b32.xlu0 %v158, 48
    %v1264 = vpop.permute.xlu0 %1263
    %v1267 = vsel %vm164, %v1262, 0
    %1269 = vmatprep.subr.mxu0 0.0
    %1270 = vmatpush1.msra.mxu0 0.0
    %1271 = vmatprep.subr.mxu0 0.0
    %1272 = vmatpush1.msra.mxu0 0.0
    %1273 = vmatprep.subr.mxu0 0.0
    %1274 = vmatpush1.msra.mxu0 0.0
    %1275 = vmatprep.subr.mxu0 0.0
    %1276 = vmatpush1.msra.mxu0 0.0
    %1277 = vmatprep.subr.mxu0 0.0
    %1278 = vmatpush1.msra.mxu0 0.0
    %1279 = vmatprep.subr.mxu0 0.0
    %1280 = vmatpush1.msra.mxu0 0.0
    %1281 = vmatprep.subr.mxu0 0.0
    %1282 = vmatpush1.msra.mxu0 0.0
    %1283 = vmatprep.subr.mxu0 0.0
    %1284 = vmatpush1.msra.mxu0 0.0
    %1285 = vmatprep.subr.mxu0 0.0
    %1286 = vmatpush1.msra.mxu0 0.0
    %1287 = vmatprep.subr.mxu0 0.0
    %1288 = vmatpush1.msra.mxu0 0.0
    %1289 = vmatprep.subr.mxu0 0.0
    %1290 = vmatpush1.msra.mxu0 0.0
    %1291 = vmatprep.subr.mxu0 0.0
    %1292 = vmatpush1.msra.mxu0 0.0
    %1293 = vmatprep.subr.mxu0 0.0
    %1294 = vmatpush1.msra.mxu0 0.0
    %1295 = vmatprep.subr.mxu0 0.0
    %1296 = vmatpush1.msra.mxu0 0.0
    %1297 = vmatprep.subr.mxu0 0.0
    %1298 = vmatpush1.msra.mxu0 0.0
    %1299 = vmatprep.subr.mxu0 0.0
    %1300 = vmatpush1.msra.mxu0 %v1264
    %1301 = vmatprep.subr.mxu0 0.0
    %1302 = vmatpush2.msra.mxu0 0.0
    %1303 = vmatprep.subr.mxu0 0.0
    %1304 = vmatpush2.msra.mxu0 0.0
    %1305 = vmatprep.subr.mxu0 0.0
    %1306 = vmatpush2.msra.mxu0 0.0
    %1307 = vmatprep.subr.mxu0 0.0
    %1308 = vmatpush2.msra.mxu0 0.0
    %1309 = vmatprep.subr.mxu0 0.0
    %1310 = vmatpush2.msra.mxu0 0.0
    %1311 = vmatprep.subr.mxu0 0.0
    %1312 = vmatpush2.msra.mxu0 0.0
    %1313 = vmatprep.subr.mxu0 0.0
    %1314 = vmatpush2.msra.mxu0 0.0
    %1315 = vmatprep.subr.mxu0 0.0
    %1316 = vmatpush2.msra.mxu0 0.0
    %1317 = vmatprep.subr.mxu0 0.0
    %1318 = vmatpush2.msra.mxu0 0.0
    %1319 = vmatprep.subr.mxu0 0.0
    %1320 = vmatpush2.msra.mxu0 0.0
    %1321 = vmatprep.subr.mxu0 0.0
    %1322 = vmatpush2.msra.mxu0 0.0
    %1323 = vmatprep.subr.mxu0 0.0
    %1324 = vmatpush2.msra.mxu0 0.0
    %1325 = vmatprep.subr.mxu0 0.0
    %1326 = vmatpush2.msra.mxu0 0.0
    %1327 = vmatprep.subr.mxu0 0.0
    %1328 = vmatpush2.msra.mxu0 0.0
    %1329 = vmatprep.subr.mxu0 0.0
    %1330 = vmatpush2.msra.mxu0 0.0
    %1331 = vmatprep.subr.mxu0 0.0
    %1332 = vmatpush2.msra.mxu0 0.0
    %1333 = vmatprep.mubr.f32.mxu0 0.0
    %1334 = vmatmul.mubr.f32.gmra.mxu0 %v1267
    %v1335 = vpop.f32.mrf.mxu0
    %v1336 = vadd.f32 0.0, %v1335
    %v1337 = vpop.f32.mrf.mxu0
    %1338 = vdwg.mxu0
    %1339 = vrot.lane.b32.xlu0 %v158, 104
    %v1340 = vpop.permute.xlu0 %1339
    %1341 = vrot.lane.b32.xlu0 %v158, 72
    %v1342 = vpop.permute.xlu0 %1341
    %v1343 = vsel %vm164, %v1340, 0
    %v1345 = vsel %vm164, %v1342, 0
    %1347 = vmatprep.subr.mxu0 0.0
    %1348 = vmatpush1.xpose.msra.mxu0 0.0
    %1349 = vmatprep.subr.mxu0 0.0
    %1350 = vmatpush1.xpose.msra.mxu0 0.0
    %1351 = vmatprep.subr.mxu0 0.0
    %1352 = vmatpush1.xpose.msra.mxu0 0.0
    %1353 = vmatprep.subr.mxu0 0.0
    %1354 = vmatpush1.xpose.msra.mxu0 0.0
    %1355 = vmatprep.subr.mxu0 0.0
    %1356 = vmatpush1.xpose.msra.mxu0 0.0
    %1357 = vmatprep.subr.mxu0 0.0
    %1358 = vmatpush1.xpose.msra.mxu0 0.0
    %1359 = vmatprep.subr.mxu0 0.0
    %1360 = vmatpush1.xpose.msra.mxu0 0.0
    %1361 = vmatprep.subr.mxu0 0.0
    %1362 = vmatpush1.xpose.msra.mxu0 0.0
    %1363 = vmatprep.subr.mxu0 0.0
    %1364 = vmatpush1.xpose.msra.mxu0 0.0
    %1365 = vmatprep.subr.mxu0 0.0
    %1366 = vmatpush1.xpose.msra.mxu0 0.0
    %1367 = vmatprep.subr.mxu0 0.0
    %1368 = vmatpush1.xpose.msra.mxu0 0.0
    %1369 = vmatprep.subr.mxu0 0.0
    %1370 = vmatpush1.xpose.msra.mxu0 0.0
    %1371 = vmatprep.subr.mxu0 0.0
    %1372 = vmatpush1.xpose.msra.mxu0 0.0
    %1373 = vmatprep.subr.mxu0 0.0
    %1374 = vmatpush1.xpose.msra.mxu0 0.0
    %1375 = vmatprep.subr.mxu0 0.0
    %1376 = vmatpush1.xpose.msra.mxu0 0.0
    %1377 = vmatprep.subr.mxu0 0.0
    %1378 = vmatpush1.xpose.msra.mxu0 %v1345
    %1379 = vmatprep.subr.mxu0 0.0
    %1380 = vmatpush2.xpose.msra.mxu0 0.0
    %1381 = vmatprep.subr.mxu0 0.0
    %1382 = vmatpush2.xpose.msra.mxu0 0.0
    %1383 = vmatprep.subr.mxu0 0.0
    %1384 = vmatpush2.xpose.msra.mxu0 0.0
    %1385 = vmatprep.subr.mxu0 0.0
    %1386 = vmatpush2.xpose.msra.mxu0 0.0
    %1387 = vmatprep.subr.mxu0 0.0
    %1388 = vmatpush2.xpose.msra.mxu0 0.0
    %1389 = vmatprep.subr.mxu0 0.0
    %1390 = vmatpush2.xpose.msra.mxu0 0.0
    %1391 = vmatprep.subr.mxu0 0.0
    %1392 = vmatpush2.xpose.msra.mxu0 0.0
    %1393 = vmatprep.subr.mxu0 0.0
    %1394 = vmatpush2.xpose.msra.mxu0 0.0
    %1395 = vmatprep.subr.mxu0 0.0
    %1396 = vmatpush2.xpose.msra.mxu0 0.0
    %1397 = vmatprep.subr.mxu0 0.0
    %1398 = vmatpush2.xpose.msra.mxu0 0.0
    %1399 = vmatprep.subr.mxu0 0.0
    %1400 = vmatpush2.xpose.msra.mxu0 0.0
    %1401 = vmatprep.subr.mxu0 0.0
    %1402 = vmatpush2.xpose.msra.mxu0 0.0
    %1403 = vmatprep.subr.mxu0 0.0
    %1404 = vmatpush2.xpose.msra.mxu0 0.0
    %1405 = vmatprep.subr.mxu0 0.0
    %1406 = vmatpush2.xpose.msra.mxu0 0.0
    %1407 = vmatprep.subr.mxu0 0.0
    %1408 = vmatpush2.xpose.msra.mxu0 0.0
    %1409 = vmatprep.subr.mxu0 0.0
    %1410 = vmatpush2.xpose.msra.mxu0 0.0
    %1411 = vmatprep.mubr.f32.mxu0 0.0
    %1412 = vmatmul.mubr.f32.gmra.mxu0 %v1343
    %v1413 = vpop.f32.mrf.mxu0
    %v1414 = vadd.f32 0.0, %v1413
    %v1415 = vpop.f32.mrf.mxu0
    %1416 = vdwg.mxu0
    %v1417 = vmul.f32 %v1414, 0.35355338
    %v1418 = vsel %vm164, %v1417, -inf
    %1419 = vmax.xlane.f32.xlu0 %v1418
    %v1420 = vpop.xlane.xlu0 %1419
    %v1421 = vsub.f32 %v1417, %v1420
    %v1422 = vmul.f32 %v1421, 1.442695
    %v1423 = vpow.pop %v1422
    %v1424 = vsel %vm164, %v1423, 0.0
    %1425 = vadd.xlane.f32.xlu0 %v1424
    %v1426 = vpop.xlane.xlu0 %1425
    %v1427 = vrcp.pop %v1426
    %v1428 = vmul.f32 %v1423, %v1427
    %1429 = vrot.lane.b32.xlu0 %v158, 40
    %v1430 = vpop.permute.xlu0 %1429
    %v1433 = vsel %vm164, %v1428, 0
    %1435 = vmatprep.subr.mxu0 0.0
    %1436 = vmatpush1.msra.mxu0 0.0
    %1437 = vmatprep.subr.mxu0 0.0
    %1438 = vmatpush1.msra.mxu0 0.0
    %1439 = vmatprep.subr.mxu0 0.0
    %1440 = vmatpush1.msra.mxu0 0.0
    %1441 = vmatprep.subr.mxu0 0.0
    %1442 = vmatpush1.msra.mxu0 0.0
    %1443 = vmatprep.subr.mxu0 0.0
    %1444 = vmatpush1.msra.mxu0 0.0
    %1445 = vmatprep.subr.mxu0 0.0
    %1446 = vmatpush1.msra.mxu0 0.0
    %1447 = vmatprep.subr.mxu0 0.0
    %1448 = vmatpush1.msra.mxu0 0.0
    %1449 = vmatprep.subr.mxu0 0.0
    %1450 = vmatpush1.msra.mxu0 0.0
    %1451 = vmatprep.subr.mxu0 0.0
    %1452 = vmatpush1.msra.mxu0 0.0
    %1453 = vmatprep.subr.mxu0 0.0
    %1454 = vmatpush1.msra.mxu0 0.0
    %1455 = vmatprep.subr.mxu0 0.0
    %1456 = vmatpush1.msra.mxu0 0.0
    %1457 = vmatprep.subr.mxu0 0.0
    %1458 = vmatpush1.msra.mxu0 0.0
    %1459 = vmatprep.subr.mxu0 0.0
    %1460 = vmatpush1.msra.mxu0 0.0
    %1461 = vmatprep.subr.mxu0 0.0
    %1462 = vmatpush1.msra.mxu0 0.0
    %1463 = vmatprep.subr.mxu0 0.0
    %1464 = vmatpush1.msra.mxu0 0.0
    %1465 = vmatprep.subr.mxu0 0.0
    %1466 = vmatpush1.msra.mxu0 %v1430
    %1467 = vmatprep.subr.mxu0 0.0
    %1468 = vmatpush2.msra.mxu0 0.0
    %1469 = vmatprep.subr.mxu0 0.0
    %1470 = vmatpush2.msra.mxu0 0.0
    %1471 = vmatprep.subr.mxu0 0.0
    %1472 = vmatpush2.msra.mxu0 0.0
    %1473 = vmatprep.subr.mxu0 0.0
    %1474 = vmatpush2.msra.mxu0 0.0
    %1475 = vmatprep.subr.mxu0 0.0
    %1476 = vmatpush2.msra.mxu0 0.0
    %1477 = vmatprep.subr.mxu0 0.0
    %1478 = vmatpush2.msra.mxu0 0.0
    %1479 = vmatprep.subr.mxu0 0.0
    %1480 = vmatpush2.msra.mxu0 0.0
    %1481 = vmatprep.subr.mxu0 0.0
    %1482 = vmatpush2.msra.mxu0 0.0
    %1483 = vmatprep.subr.mxu0 0.0
    %1484 = vmatpush2.msra.mxu0 0.0
    %1485 = vmatprep.subr.mxu0 0.0
    %1486 = vmatpush2.msra.mxu0 0.0
    %1487 = vmatprep.subr.mxu0 0.0
    %1488 = vmatpush2.msra.mxu0 0.0
    %1489 = vmatprep.subr.mxu0 0.0
    %1490 = vmatpush2.msra.mxu0 0.0
    %1491 = vmatprep.subr.mxu0 0.0
    %1492 = vmatpush2.msra.mxu0 0.0
    %1493 = vmatprep.subr.mxu0 0.0
    %1494 = vmatpush2.msra.mxu0 0.0
    %1495 = vmatprep.subr.mxu0 0.0
    %1496 = vmatpush2.msra.mxu0 0.0
    %1497 = vmatprep.subr.mxu0 0.0
    %1498 = vmatpush2.msra.mxu0 0.0
    %1499 = vmatprep.mubr.f32.mxu0 0.0
    %1500 = vmatmul.mubr.f32.gmra.mxu0 %v1433
    %v1501 = vpop.f32.mrf.mxu0
    %v1502 = vadd.f32 0.0, %v1501
    %v1503 = vpop.f32.mrf.mxu0
    %1504 = vdwg.mxu0
    %1506 = vrot.lane.b32.xlu0 %v1170, 8
    %v1507 = vpop.permute.xlu0 %1506
    %1510 = vrot.lane.b32.xlu0 %v1336, 16
    %v1511 = vpop.permute.xlu0 %1510
    %1514 = vrot.lane.b32.xlu0 %v1502, 24
    %v1515 = vpop.permute.xlu0 %1514
    %v1517 = vsel %vm164, %v1004, %v1507
    %v1518 = vsel %vm838, %v1517, %v1511
    %v1519 = vsel %vm840, %v1518, %v1515
    %v1520 = vlaneseq
    %v1521 = vshrl.u32 %v1520, 7
    %v1522 = vsub.s32 0, %v1521
    %v1523 = vrot.slane %v48, %v1522
    %vm1524 = vcmask 261120
    %v1526 = vsel %vm1524, %v841, 0
    %v1529 = vsel %vm1524, %v1519, 0
    %1531 = vmatprep.subr.mxu0 0.0
    %1532 = vmatpush1.msra.mxu0 0.0
    %1533 = vmatprep.subr.mxu0 0.0
    %1534 = vmatpush1.msra.mxu0 0.0
    %1535 = vmatprep.subr.mxu0 0.0
    %1536 = vmatpush1.msra.mxu0 0.0
    %1537 = vmatprep.subr.mxu0 0.0
    %1538 = vmatpush1.msra.mxu0 0.0
    %1539 = vmatprep.subr.mxu0 0.0
    %1540 = vmatpush1.msra.mxu0 0.0
    %1541 = vmatprep.subr.mxu0 0.0
    %1542 = vmatpush1.msra.mxu0 0.0
    %1543 = vmatprep.subr.mxu0 0.0
    %1544 = vmatpush1.msra.mxu0 0.0
    %1545 = vmatprep.subr.mxu0 0.0
    %1546 = vmatpush1.msra.mxu0 0.0
    %1547 = vmatprep.subr.mxu0 0.0
    %1548 = vmatpush1.msra.mxu0 0.0
    %1549 = vmatprep.subr.mxu0 0.0
    %1550 = vmatpush1.msra.mxu0 0.0
    %1551 = vmatprep.subr.mxu0 0.0
    %1552 = vmatpush1.msra.mxu0 0.0
    %1553 = vmatprep.subr.mxu0 0.0
    %1554 = vmatpush1.msra.mxu0 0.0
    %1555 = vmatprep.subr.mxu0 0.0
    %1556 = vmatpush1.msra.mxu0 %v58
    %1557 = vmatprep.subr.mxu0 0.0
    %1558 = vmatpush1.msra.mxu0 %v57
    %1559 = vmatprep.subr.mxu0 0.0
    %1560 = vmatpush1.msra.mxu0 %v56
    %1561 = vmatprep.subr.mxu0 0.0
    %1562 = vmatpush1.msra.mxu0 %v55
    %1563 = vmatprep.subr.mxu0 0.0
    %1564 = vmatpush2.msra.mxu0 0.0
    %1565 = vmatprep.subr.mxu0 0.0
    %1566 = vmatpush2.msra.mxu0 0.0
    %1567 = vmatprep.subr.mxu0 0.0
    %1568 = vmatpush2.msra.mxu0 0.0
    %1569 = vmatprep.subr.mxu0 0.0
    %1570 = vmatpush2.msra.mxu0 0.0
    %1571 = vmatprep.subr.mxu0 0.0
    %1572 = vmatpush2.msra.mxu0 0.0
    %1573 = vmatprep.subr.mxu0 0.0
    %1574 = vmatpush2.msra.mxu0 0.0
    %1575 = vmatprep.subr.mxu0 0.0
    %1576 = vmatpush2.msra.mxu0 0.0
    %1577 = vmatprep.subr.mxu0 0.0
    %1578 = vmatpush2.msra.mxu0 0.0
    %1579 = vmatprep.subr.mxu0 0.0
    %1580 = vmatpush2.msra.mxu0 0.0
    %1581 = vmatprep.subr.mxu0 0.0
    %1582 = vmatpush2.msra.mxu0 0.0
    %1583 = vmatprep.subr.mxu0 0.0
    %1584 = vmatpush2.msra.mxu0 0.0
    %1585 = vmatprep.subr.mxu0 0.0
    %1586 = vmatpush2.msra.mxu0 0.0
    %1587 = vmatprep.subr.mxu0 0.0
    %1588 = vmatpush2.msra.mxu0 0.0
    %1589 = vmatprep.subr.mxu0 0.0
    %1590 = vmatpush2.msra.mxu0 0.0
    %1591 = vmatprep.subr.mxu0 0.0
    %1592 = vmatpush2.msra.mxu0 0.0
    %1593 = vmatprep.subr.mxu0 0.0
    %1594 = vmatpush2.msra.mxu0 0.0
    %1595 = vmatprep.mubr.f32.mxu0 0.0
    %1596 = vmatmul.mubr.f32.gmra.mxu0 %v1526
    %v1597 = vpop.f32.mrf.mxu0
    %v1598 = vadd.f32 %v1523, %v1597
    %v1599 = vpop.f32.mrf.mxu0
    %1600 = vmatprep.mubr.f32.mxu0 0.0
    %1601 = vmatmul.mubr.f32.gmra.mxu0 %v1529
    %v1602 = vpop.f32.mrf.mxu0
    %v1603 = vadd.f32 %v1523, %v1602
    %v1604 = vpop.f32.mrf.mxu0
    %1605 = vdwg.mxu0
    %v1606 = vadd.f32 %v1598, %v46
    %v1607 = vadd.f32 %v1603, %v47
    %v1608 = vsel %vm1524, %v1606, 0.0
    %1609 = vadd.xlane.f32.xlu0 %v1608
    %v1610 = vpop.xlane.xlu0 %1609
    %v1611 = vsel %vm1524, %v1607, 0.0
    %1612 = vadd.xlane.f32.xlu0 %v1611
    %v1613 = vpop.xlane.xlu0 %1612
    %v1614 = vrcp.pop 32.0
    %v1615 = vmul.f32 %v1610, %v1614
    %v1616 = vmul.f32 %v1613, %v1614
    %v1617 = vmul.f32 %v1606, %v1606
    %v1618 = vmul.f32 %v1607, %v1607
    %v1619 = vsel %vm1524, %v1617, 0.0
    %1620 = vadd.xlane.f32.xlu0 %v1619
    %v1621 = vpop.xlane.xlu0 %1620
    %v1622 = vsel %vm1524, %v1618, 0.0
    %1623 = vadd.xlane.f32.xlu0 %v1622
    %v1624 = vpop.xlane.xlu0 %1623
    %v1625 = vmul.f32 %v1621, %v1614
    %v1626 = vmul.f32 %v1624, %v1614
    %v1627 = vmul.f32 %v1615, %v1615
    %v1628 = vmul.f32 %v1616, %v1616
    %v1629 = vsub.f32 %v1625, %v1627
    %v1630 = vsub.f32 %v1626, %v1628
    %v1631 = vsub.f32 %v1606, %v1615
    %v1632 = vsub.f32 %v1607, %v1616
    %v1633 = vadd.f32 %v1629, 1e-05
    %v1634 = vadd.f32 %v1630, 1e-05
    %v1635 = vrsqrt.pop %v1633
    %v1636 = vrsqrt.pop %v1634
    %v1637 = vmul.f32 %v1631, %v1635
    %v1638 = vmul.f32 %v1632, %v1636
    %v1639 = vlaneseq
    %v1640 = vshrl.u32 %v1639, 7
    %v1641 = vsub.s32 0, %v1640
    %v1642 = vrot.slane %v49, %v1641
    %v1643 = vmul.f32 %v1637, %v1642
    %v1644 = vmul.f32 %v1638, %v1642
    %v1645 = vlaneseq
    %v1646 = vshrl.u32 %v1645, 7
    %v1647 = vsub.s32 0, %v1646
    %v1648 = vrot.slane %v50, %v1647
    %v1649 = vadd.f32 %v1643, %v1648
    %v1650 = vadd.f32 %v1644, %v1648
    %v1651 = vlaneseq
    %v1652 = vshrl.u32 %v1651, 7
    %v1653 = vsub.s32 0, %v1652
    %v1654 = vrot.slane %v54, %v1653
    %v1656 = vsel %vm1524, %v1649, 0
    %v1659 = vsel %vm1524, %v1650, 0
    %1661 = vmatprep.subr.mxu0 0.0
    %1662 = vmatpush1.msra.mxu0 0.0
    %1663 = vmatprep.subr.mxu0 0.0
    %1664 = vmatpush1.msra.mxu0 0.0
    %1665 = vmatprep.subr.mxu0 0.0
    %1666 = vmatpush1.msra.mxu0 0.0
    %1667 = vmatprep.subr.mxu0 0.0
    %1668 = vmatpush1.msra.mxu0 0.0
    %1669 = vmatprep.subr.mxu0 0.0
    %1670 = vmatpush1.msra.mxu0 0.0
    %1671 = vmatprep.subr.mxu0 0.0
    %1672 = vmatpush1.msra.mxu0 0.0
    %1673 = vmatprep.subr.mxu0 0.0
    %1674 = vmatpush1.msra.mxu0 0.0
    %1675 = vmatprep.subr.mxu0 0.0
    %1676 = vmatpush1.msra.mxu0 0.0
    %1677 = vmatprep.subr.mxu0 0.0
    %1678 = vmatpush1.msra.mxu0 0.0
    %1679 = vmatprep.subr.mxu0 0.0
    %1680 = vmatpush1.msra.mxu0 0.0
    %1681 = vmatprep.subr.mxu0 0.0
    %1682 = vmatpush1.msra.mxu0 0.0
    %1683 = vmatprep.subr.mxu0 0.0
    %1684 = vmatpush1.msra.mxu0 0.0
    %1685 = vmatprep.subr.mxu0 0.0
    %1686 = vmatpush1.msra.mxu0 %v62
    %1687 = vmatprep.subr.mxu0 0.0
    %1688 = vmatpush1.msra.mxu0 %v61
    %1689 = vmatprep.subr.mxu0 0.0
    %1690 = vmatpush1.msra.mxu0 %v60
    %1691 = vmatprep.subr.mxu0 0.0
    %1692 = vmatpush1.msra.mxu0 %v59
    %1693 = vmatprep.subr.mxu0 0.0
    %1694 = vmatpush2.msra.mxu0 0.0
    %1695 = vmatprep.subr.mxu0 0.0
    %1696 = vmatpush2.msra.mxu0 0.0
    %1697 = vmatprep.subr.mxu0 0.0
    %1698 = vmatpush2.msra.mxu0 0.0
    %1699 = vmatprep.subr.mxu0 0.0
    %1700 = vmatpush2.msra.mxu0 0.0
    %1701 = vmatprep.subr.mxu0 0.0
    %1702 = vmatpush2.msra.mxu0 0.0
    %1703 = vmatprep.subr.mxu0 0.0
    %1704 = vmatpush2.msra.mxu0 0.0
    %1705 = vmatprep.subr.mxu0 0.0
    %1706 = vmatpush2.msra.mxu0 0.0
    %1707 = vmatprep.subr.mxu0 0.0
    %1708 = vmatpush2.msra.mxu0 0.0
    %1709 = vmatprep.subr.mxu0 0.0
    %1710 = vmatpush2.msra.mxu0 0.0
    %1711 = vmatprep.subr.mxu0 0.0
    %1712 = vmatpush2.msra.mxu0 0.0
    %1713 = vmatprep.subr.mxu0 0.0
    %1714 = vmatpush2.msra.mxu0 0.0
    %1715 = vmatprep.subr.mxu0 0.0
    %1716 = vmatpush2.msra.mxu0 0.0
    %1717 = vmatprep.subr.mxu0 0.0
    %1718 = vmatpush2.msra.mxu0 0.0
    %1719 = vmatprep.subr.mxu0 0.0
    %1720 = vmatpush2.msra.mxu0 0.0
    %1721 = vmatprep.subr.mxu0 0.0
    %1722 = vmatpush2.msra.mxu0 0.0
    %1723 = vmatprep.subr.mxu0 0.0
    %1724 = vmatpush2.msra.mxu0 0.0
    %1725 = vmatprep.mubr.f32.mxu0 0.0
    %1726 = vmatmul.mubr.f32.gmra.mxu0 %v1656
    %v1727 = vpop.f32.mrf.mxu0
    %v1728 = vadd.f32 %v1654, %v1727
    %v1729 = vpop.f32.mrf.mxu0
    %1730 = vmatprep.mubr.f32.mxu0 0.0
    %1731 = vmatmul.mubr.f32.gmra.mxu0 %v1659
    %v1732 = vpop.f32.mrf.mxu0
    %v1733 = vadd.f32 %v1654, %v1732
    %v1734 = vpop.f32.mrf.mxu0
    %1735 = vdwg.mxu0
    %v1736 = vmax.f32 %v1728, 0.0
    %v1737 = vmax.f32 %v1733, 0.0
    %v1738 = vlaneseq
    %v1739 = vshrl.u32 %v1738, 7
    %v1740 = vsub.s32 0, %v1739
    %v1741 = vrot.slane %v51, %v1740
    %1742 = vmatprep.subr.mxu0 0.0
    %1743 = vmatpush1.xpose.msra.mxu0 0.0
    %1744 = vmatprep.subr.mxu0 0.0
    %1745 = vmatpush1.xpose.msra.mxu0 0.0
    %1746 = vmatprep.subr.mxu0 0.0
    %1747 = vmatpush1.xpose.msra.mxu0 0.0
    %1748 = vmatprep.subr.mxu0 0.0
    %1749 = vmatpush1.xpose.msra.mxu0 0.0
    %1750 = vmatprep.subr.mxu0 0.0
    %1751 = vmatpush1.xpose.msra.mxu0 0.0
    %1752 = vmatprep.subr.mxu0 0.0
    %1753 = vmatpush1.xpose.msra.mxu0 0.0
    %1754 = vmatprep.subr.mxu0 0.0
    %1755 = vmatpush1.xpose.msra.mxu0 0.0
    %1756 = vmatprep.subr.mxu0 0.0
    %1757 = vmatpush1.xpose.msra.mxu0 0.0
    %1758 = vmatprep.subr.mxu0 0.0
    %1759 = vmatpush1.xpose.msra.mxu0 0.0
    %1760 = vmatprep.subr.mxu0 0.0
    %1761 = vmatpush1.xpose.msra.mxu0 0.0
    %1762 = vmatprep.subr.mxu0 0.0
    %1763 = vmatpush1.xpose.msra.mxu0 0.0
    %1764 = vmatprep.subr.mxu0 0.0
    %1765 = vmatpush1.xpose.msra.mxu0 0.0
    %1766 = vmatprep.subr.mxu0 0.0
    %1767 = vmatpush1.xpose.msra.mxu0 %v66
    %1768 = vmatprep.subr.mxu0 0.0
    %1769 = vmatpush1.xpose.msra.mxu0 %v65
    %1770 = vmatprep.subr.mxu0 0.0
    %1771 = vmatpush1.xpose.msra.mxu0 %v64
    %1772 = vmatprep.subr.mxu0 0.0
    %1773 = vmatpush1.xpose.msra.mxu0 %v63
    %1774 = vmatprep.subr.mxu0 0.0
    %1775 = vmatpush2.xpose.msra.mxu0 0.0
    %1776 = vmatprep.subr.mxu0 0.0
    %1777 = vmatpush2.xpose.msra.mxu0 0.0
    %1778 = vmatprep.subr.mxu0 0.0
    %1779 = vmatpush2.xpose.msra.mxu0 0.0
    %1780 = vmatprep.subr.mxu0 0.0
    %1781 = vmatpush2.xpose.msra.mxu0 0.0
    %1782 = vmatprep.subr.mxu0 0.0
    %1783 = vmatpush2.xpose.msra.mxu0 0.0
    %1784 = vmatprep.subr.mxu0 0.0
    %1785 = vmatpush2.xpose.msra.mxu0 0.0
    %1786 = vmatprep.subr.mxu0 0.0
    %1787 = vmatpush2.xpose.msra.mxu0 0.0
    %1788 = vmatprep.subr.mxu0 0.0
    %1789 = vmatpush2.xpose.msra.mxu0 0.0
    %1790 = vmatprep.subr.mxu0 0.0
    %1791 = vmatpush2.xpose.msra.mxu0 0.0
    %1792 = vmatprep.subr.mxu0 0.0
    %1793 = vmatpush2.xpose.msra.mxu0 0.0
    %1794 = vmatprep.subr.mxu0 0.0
    %1795 = vmatpush2.xpose.msra.mxu0 0.0
    %1796 = vmatprep.subr.mxu0 0.0
    %1797 = vmatpush2.xpose.msra.mxu0 0.0
    %1798 = vmatprep.subr.mxu0 0.0
    %1799 = vmatpush2.xpose.msra.mxu0 0.0
    %1800 = vmatprep.subr.mxu0 0.0
    %1801 = vmatpush2.xpose.msra.mxu0 0.0
    %1802 = vmatprep.subr.mxu0 0.0
    %1803 = vmatpush2.xpose.msra.mxu0 0.0
    %1804 = vmatprep.subr.mxu0 0.0
    %1805 = vmatpush2.xpose.msra.mxu0 0.0
    %1806 = vmatprep.mubr.f32.mxu0 0.0
    %1807 = vmatmul.mubr.f32.gmra.mxu0 %v1736
    %v1808 = vpop.f32.mrf.mxu0
    %v1809 = vadd.f32 %v1741, %v1808
    %v1810 = vpop.f32.mrf.mxu0
    %1811 = vmatprep.mubr.f32.mxu0 0.0
    %1812 = vmatmul.mubr.f32.gmra.mxu0 %v1737
    %v1813 = vpop.f32.mrf.mxu0
    %v1814 = vadd.f32 %v1741, %v1813
    %v1815 = vpop.f32.mrf.mxu0
    %1816 = vdwg.mxu0
    %v1817 = vadd.f32 %v1649, %v1809
    %v1818 = vadd.f32 %v1650, %v1814
    %v1819 = vsel %vm1524, %v1817, 0.0
    %1820 = vadd.xlane.f32.xlu0 %v1819
    %v1821 = vpop.xlane.xlu0 %1820
    %v1822 = vsel %vm1524, %v1818, 0.0
    %1823 = vadd.xlane.f32.xlu0 %v1822
    %v1824 = vpop.xlane.xlu0 %1823
    %v1825 = vmul.f32 %v1821, %v1614
    %v1826 = vmul.f32 %v1824, %v1614
    %v1827 = vmul.f32 %v1817, %v1817
    %v1828 = vmul.f32 %v1818, %v1818
    %v1829 = vsel %vm1524, %v1827, 0.0
    %1830 = vadd.xlane.f32.xlu0 %v1829
    %v1831 = vpop.xlane.xlu0 %1830
    %v1832 = vsel %vm1524, %v1828, 0.0
    %1833 = vadd.xlane.f32.xlu0 %v1832
    %v1834 = vpop.xlane.xlu0 %1833
    %v1835 = vmul.f32 %v1831, %v1614
    %v1836 = vmul.f32 %v1834, %v1614
    %v1837 = vmul.f32 %v1825, %v1825
    %v1838 = vmul.f32 %v1826, %v1826
    %v1839 = vsub.f32 %v1835, %v1837
    %v1840 = vsub.f32 %v1836, %v1838
    %v1841 = vsub.f32 %v1817, %v1825
    %v1842 = vsub.f32 %v1818, %v1826
    %v1843 = vadd.f32 %v1839, 1e-05
    %v1844 = vadd.f32 %v1840, 1e-05
    %v1845 = vrsqrt.pop %v1843
    %v1846 = vrsqrt.pop %v1844
    %v1847 = vmul.f32 %v1841, %v1845
    %v1848 = vmul.f32 %v1842, %v1846
    %v1849 = vlaneseq
    %v1850 = vshrl.u32 %v1849, 7
    %v1851 = vsub.s32 0, %v1850
    %v1852 = vrot.slane %v52, %v1851
    %v1853 = vmul.f32 %v1847, %v1852
    %v1854 = vmul.f32 %v1848, %v1852
    %v1855 = vlaneseq
    %v1856 = vshrl.u32 %v1855, 7
    %v1857 = vsub.s32 0, %v1856
    %v1858 = vrot.slane %v53, %v1857
    %v1859 = vadd.f32 %v1853, %v1858
    %v1860 = vadd.f32 %v1854, %v1858
    %1861 = vst.msk [vmem:[#allocation7] sm:$0xff] %vm1524, %v1859
    %1862 = vst.msk [vmem:[#allocation7 + $0x8] sm:$0xff] %vm1524, %v1860
    // Predicated region
    $region26: #{encoder_block.1} parent=1 // pred_check
      _
    $region27: #{encoder_block.1} parent=1 // pred_check_branch
      %1864 = sbr.rel (0) target = $region29
    $region28: #{encoder_block.1} parent=1 // pred_region
      %s1866 = ssub.s32 256, 256
      %1867 = vsyncadd [#allocation4], %s1866
      %s1868 = sshll.u32 [#allocation7], 4
      %s1869 = int_to_ptr.vmem [resolvable:$true] %s1868
      %1874 = dma.vmem_to_hbm [thread:$0]  %s1869, 256, %s4, [#allocation4], 128, 128, 8
    $region29: #{encoder_block.1} parent=1 // pred_fallthru
      _
    // Predicated region
    $region30: #{encoder_block.1} parent=1 // pred_check
      _
    $region31: #{encoder_block.1} parent=1 // pred_check_branch
      %1876 = sbr.rel (0) target = $region33
    $region32: #{encoder_block.1} parent=1 // pred_region
      %1877 = dma.done [#allocation4], 256
    $region33: #{encoder_block.1} parent=1 // pred_fallthru
      _
    %1878 = vsyncpa [#allocation3], 1
    %1879 = vsyncpa [#allocation6], 1
    %1880 = vsyncpa [#allocation4], 1

</llo_original>
